<compile_context>
chip_gen: v5e
topology: v5e:2x2
jax: 0.10.0
libtpu: 0.0.40
codegen_flags: <defaults>
</compile_context>

<pallas_src>
import functools

import jax
import jax.numpy as jnp
from jax.experimental import pallas as pl
from jax.experimental.pallas import tpu as pltpu

BN_EPS = 1e-5  # nn.BatchNorm2d default eps


# ------------------------------- fused kernel --------------------------------

def _mnist_block_kernel(x_ref, scale_ref, shift_ref, w3_ref, o_ref,
                        hp_ref, patch_ref, *, add_identity):
    """Per-image: BN(scale/shift)+ReLU -> im2col -> ONE MXU dot -> (+x) -> out.

    x_ref     : (1, H, W, Cin)  f32        input image (NHWC block)
    scale_ref : (1, Cin)        f32        gamma * rsqrt(var + eps)   (batch stats)
    shift_ref : (1, Cin)        f32        beta  - mean * scale
    w3_ref    : (9*Cin, Cout)   mxu dtype  3x3 taps flattened; projection
                                           shortcut already folded into tap 4
    o_ref     : (1, H, W, Cout)            dense (stride-1) output block
    hp_ref    : (1, H+2, W+2, Cin) scratch zero-padded activation (mxu dtype)
    patch_ref : (H*W, 9*Cin)       scratch im2col patches          (mxu dtype)
    """
    _, H, W, Cin = x_ref.shape
    Cout = w3_ref.shape[-1]
    HW = H * W
    mdt = hp_ref.dtype

    x2 = x_ref[...].reshape(HW, Cin)                       # f32, channel-minor

    # --- BatchNorm (precomputed batch-stat scale/shift) + ReLU, f32 VPU ------
    h2 = jnp.maximum(x2 * scale_ref[...] + shift_ref[...], 0.0)

    # --- zero-padded activation in MXU dtype: zero the 1-px halo only, write
    #     the interior exactly once (relu(bn(0)) != 0, so padding is post-act).
    zrow = jnp.zeros((1, 1, W + 2, Cin), mdt)
    zcol = jnp.zeros((1, H, 1, Cin), mdt)
    hp_ref[:, 0:1, :, :] = zrow
    hp_ref[:, H + 1:H + 2, :, :] = zrow
    hp_ref[:, 1:H + 1, 0:1, :] = zcol
    hp_ref[:, 1:H + 1, W + 1:W + 2, :] = zcol
    hp_ref[:, 1:H + 1, 1:W + 1, :] = h2.astype(mdt).reshape(1, H, W, Cin)

    # --- im2col: nine shifted windows concatenated on the lane axis ----------
    for kh in range(3):
        for kw in range(3):
            t = kh * 3 + kw
            win = hp_ref[:, kh:kh + H, kw:kw + W, :].reshape(HW, Cin)
            patch_ref[:, t * Cin:(t + 1) * Cin] = win

    # --- ONE MXU pass: (HW, 9*Cin) @ (9*Cin, Cout), f32 accumulation ---------
    acc = jnp.dot(patch_ref[...], w3_ref[...],
                  preferred_element_type=jnp.float32)

    if add_identity:
        acc = acc + x2        # identity shortcut adds the RAW input x
    # (projection shortcut, when present, is folded into the centre tap of w3)

    o_ref[...] = acc.reshape(1, H, W, Cout).astype(o_ref.dtype)


# ----------------------------- wrapper / params -------------------------------

def prepare_params(torch_params, mxu_dtype=jnp.bfloat16):
    """One-time conversion of PyTorch-layout weights to MXU-friendly layouts.

    mxu_dtype: dtype fed to the MXU (bf16-native on v5e/v6e/v7x); None -> f32.
    The 1x1 projection shortcut (if present) is folded into the centre 3x3 tap.
    """
    w3 = torch_params["conv1_w"]                           # (Cout, Cin, 3, 3)
    cout, cin = w3.shape[0], w3.shape[1]
    # w3p[kh*3+kw, ci, co] == torch_w[co, ci, kh, kw]
    w3p = jnp.transpose(w3, (2, 3, 1, 0)).reshape(9, cin, cout).astype(jnp.float32)
    if "shortcut_w" in torch_params:
        wsc = torch_params["shortcut_w"].reshape(cout, cin)    # (Cout, Cin, 1, 1)
        # centre window of the padded activation is exactly h, so adding the
        # 1x1 projection weight to tap (kh=1, kw=1) is mathematically identical
        # (and stays correct under the stride-phase-0 subsampling).
        w3p = w3p.at[4].add(jnp.transpose(wsc, (1, 0)).astype(jnp.float32))
    wdt = jnp.float32 if mxu_dtype is None else mxu_dtype
    return {
        "gamma": torch_params["bn1_w"].astype(jnp.float32),
        "beta": torch_params["bn1_b"].astype(jnp.float32),
        "w3": w3p.reshape(9 * cin, cout).astype(wdt),
    }


def mnist_block_forward(params, x_nchw, *, stride=1, eps=BN_EPS):
    """MNISTBlock forward. x_nchw: (N, Cin, H, W) float32; returns NCHW."""
    N, Cin, H, W = x_nchw.shape
    w3 = params["w3"]
    Cout = w3.shape[-1]
    assert w3.shape[0] == 9 * Cin, "weight/channel mismatch"
    # Same rule as the PyTorch module; prepare_params folded the 1x1 projection
    # into w3 exactly when the module has a shortcut conv.
    has_projection = (stride != 1) or (Cin != Cout)
    mxu_dt = w3.dtype

    # TODO(synk): hoist this NCHW<->NHWC relayout to the model boundary if the
    # surrounding network can stay NHWC; it is a full HBM pass per call.
    x = jnp.transpose(x_nchw, (0, 2, 3, 1))               # NHWC, once per call

    # BatchNorm batch statistics (biased var, as PyTorch uses for normalization)
    # hoisted out of the kernel: a (Cin,)-sized one-pass reduction in XLA, so
    # the kernel grid can be fully 'parallel' (v7x megacore) and tiled freely.
    mean = jnp.mean(x, axis=(0, 1, 2))
    mean_sq = jnp.mean(jnp.square(x), axis=(0, 1, 2))
    var = mean_sq - jnp.square(mean)
    scale = (params["gamma"] * jax.lax.rsqrt(var + eps)).reshape(1, Cin)
    shift = (params["beta"] - mean * params["gamma"]
             * jax.lax.rsqrt(var + eps)).reshape(1, Cin)
    scale = scale.astype(jnp.float32)
    shift = shift.astype(jnp.float32)

    kernel = functools.partial(_mnist_block_kernel,
                               add_identity=not has_projection)
    y = pl.pallas_call(
        kernel,
        out_shape=jax.ShapeDtypeStruct((N, H, W, Cout), x.dtype),
        grid=(N,),
        in_specs=[
            pl.BlockSpec((1, H, W, Cin), lambda n: (n, 0, 0, 0)),   # x
            pl.BlockSpec((1, Cin), lambda n: (0, 0)),               # scale
            pl.BlockSpec((1, Cin), lambda n: (0, 0)),               # shift
            pl.BlockSpec((9 * Cin, Cout), lambda n: (0, 0)),        # w3
        ],
        out_specs=pl.BlockSpec((1, H, W, Cout), lambda n: (n, 0, 0, 0)),
        scratch_shapes=[
            pltpu.VMEM((1, H + 2, W + 2, Cin), mxu_dt),   # padded activation
            pltpu.VMEM((H * W, 9 * Cin), mxu_dt),         # im2col patches
        ],
        # Batch axis is embarrassingly parallel (stats precomputed): lets v7x
        # split it across its 2 TensorCores; no effect on v5e/v6e (1 TC).
        # For large spatial sizes add a row-tile grid axis (1-row halo) and
        # raise vmem_limit_bytes (v5e scoped default is only 16 MiB).
        compiler_params=pltpu.CompilerParams(dimension_semantics=("parallel",)),
    )(x, scale, shift, w3)

    if stride != 1:
        # The kernel computes the dense (stride-1) output grid; for kernel=3 /
        # pad=1 the strided conv is exactly its phase-0 subsampling.
        # TODO(synk): subsample inside the kernel (strided window reads) so the
        # dropped pixels are neither computed nor written back to HBM.
        y = y[:, ::stride, ::stride, :]
    return jnp.transpose(y, (0, 3, 1, 2))                 # NCHW at API boundary


# ------------------------------ pure-XLA reference ----------------------------

def _reference_forward(torch_params, x, stride, eps=BN_EPS):
    """Reference MNISTBlock forward (training-mode BatchNorm) in plain XLA."""
    g = torch_params["bn1_w"].reshape(1, -1, 1, 1)
    b = torch_params["bn1_b"].reshape(1, -1, 1, 1)
    mean = jnp.mean(x, axis=(0, 2, 3), keepdims=True)
    var = jnp.mean((x - mean) ** 2, axis=(0, 2, 3), keepdims=True)
    h = jnp.maximum((x - mean) * jax.lax.rsqrt(var + eps) * g + b, 0.0)
    out = jax.lax.conv_general_dilated(
        h, torch_params["conv1_w"], (stride, stride), ((1, 1), (1, 1)),
        dimension_numbers=("NCHW", "OIHW", "NCHW"),
        precision=jax.lax.Precision.HIGHEST)
    if "shortcut_w" in torch_params:
        sc = jax.lax.conv_general_dilated(
            h, torch_params["shortcut_w"], (stride, stride), ((0, 0), (0, 0)),
            dimension_numbers=("NCHW", "OIHW", "NCHW"),
            precision=jax.lax.Precision.HIGHEST)
    else:
        sc = x
    return out + sc


def _make_torch_params(key, in_planes, planes, stride):
    ks = jax.random.split(key, 4)
    p = {
        "bn1_w": 1.0 + 0.1 * jax.random.normal(ks[0], (in_planes,), jnp.float32),
        "bn1_b": 0.1 * jax.random.normal(ks[1], (in_planes,), jnp.float32),
        "conv1_w": 0.1 * jax.random.normal(ks[2], (planes, in_planes, 3, 3),
                                           jnp.float32),
    }
    if stride != 1 or in_planes != planes:
        p["shortcut_w"] = 0.1 * jax.random.normal(
            ks[3], (planes, in_planes, 1, 1), jnp.float32)
    return p


# ----------------------------------- main --------------------------------------

if __name__ == "__main__":
    key = jax.random.PRNGKey(0)
    kx, kp = jax.random.split(key)

    N, H, W = 2, 16, 16
    configs = [
        (16, 32, 1),   # projection shortcut (in_planes != planes), stride 1
        (16, 16, 1),   # identity shortcut
        (16, 32, 2),   # projection shortcut, stride 2
    ]
    pkeys = jax.random.split(kp, len(configs))

    for cfg_i, (cin, cout, stride) in enumerate(configs):
        torch_p = _make_torch_params(pkeys[cfg_i], cin, cout, stride)
        x = jax.random.normal(jax.random.fold_in(kx, cfg_i), (N, cin, H, W),
                              jnp.float32)
        ref = _reference_forward(torch_p, x, stride)
        oh = (H + 2 - 3) // stride + 1
        ow = (W + 2 - 3) // stride + 1

        # f32 MXU path with a tight-ish tolerance catches layout/indexing bugs;
        # the default bf16 MXU path is exercised with a bf16-appropriate bound.
        for label, mxu_dtype, tol in (("f32", jnp.float32, 3e-2),
                                      ("bf16", jnp.bfloat16, 1e-1)):
            params = prepare_params(torch_p, mxu_dtype=mxu_dtype)
            fwd = jax.jit(functools.partial(mnist_block_forward, stride=stride))
            out = jax.block_until_ready(fwd(params, x))
            assert out.shape == (N, cout, oh, ow), out.shape
            assert bool(jnp.all(jnp.isfinite(out)))
            err = float(jnp.max(jnp.abs(out - ref)))
            assert err < tol, f"config {cfg_i} ({label}): max abs err {err}"

    print("KERNEL_OK")
</pallas_src>

<mosaic_0001>
module attributes {stable_mosaic.version = 11 : i64} {
  func.func @_mnist_block_kernel(%arg0: i32, %arg1: memref<1x16x16x16xf32, #tpu.memory_space<vmem>>, %arg2: memref<1x16xf32, #tpu.memory_space<vmem>>, %arg3: memref<1x16xf32, #tpu.memory_space<vmem>>, %arg4: memref<144x32xf32, #tpu.memory_space<vmem>>, %arg5: memref<1x16x16x32xf32, #tpu.memory_space<vmem>>, %arg6: memref<1x18x18x16xf32, #tpu.memory_space<vmem>>, %arg7: memref<256x144xf32, #tpu.memory_space<vmem>>) attributes {dimension_semantics = [#tpu.dimension_semantics<parallel>], iteration_bounds = array<i64: 2>, scalar_prefetch = 0 : i64, scratch_operands = 2 : i64, tpu.core_type = #tpu.core_type<tc>, window_params = [{transform_indices = @transform_0, window_bounds = array<i64: 1, 16, 16, 16>}, {pipeline_mode = #tpu.pipeline_mode<synchronous>, transform_indices = @transform_1, window_bounds = array<i64: 1, 16>}, {pipeline_mode = #tpu.pipeline_mode<synchronous>, transform_indices = @transform_2, window_bounds = array<i64: 1, 16>}, {pipeline_mode = #tpu.pipeline_mode<synchronous>, transform_indices = @transform_3, window_bounds = array<i64: 144, 32>}, {transform_indices = @transform_4, window_bounds = array<i64: 1, 16, 16, 32>}]} {
    %c0 = arith.constant 0 : index
    %c0_0 = arith.constant 0 : index
    %c0_1 = arith.constant 0 : index
    %c0_2 = arith.constant 0 : index
    %0 = vector.load %arg1[%c0, %c0_0, %c0_1, %c0_2] : memref<1x16x16x16xf32, #tpu.memory_space<vmem>>, vector<1x16x16x16xf32>
    %1 = vector.shape_cast %0 : vector<1x16x16x16xf32> to vector<256x16xf32>
    %c0_3 = arith.constant 0 : index
    %c0_4 = arith.constant 0 : index
    %2 = vector.load %arg2[%c0_3, %c0_4] : memref<1x16xf32, #tpu.memory_space<vmem>>, vector<1x16xf32>
    %3 = vector.broadcast %2 : vector<1x16xf32> to vector<256x16xf32>
    %4 = arith.mulf %1, %3 : vector<256x16xf32>
    %c0_5 = arith.constant 0 : index
    %c0_6 = arith.constant 0 : index
    %5 = vector.load %arg3[%c0_5, %c0_6] : memref<1x16xf32, #tpu.memory_space<vmem>>, vector<1x16xf32>
    %6 = vector.broadcast %5 : vector<1x16xf32> to vector<256x16xf32>
    %7 = arith.addf %4, %6 : vector<256x16xf32>
    %cst = arith.constant 0.000000e+00 : f32
    %8 = vector.broadcast %cst : f32 to vector<256x16xf32>
    %9 = arith.maximumf %7, %8 : vector<256x16xf32>
    %cst_7 = arith.constant 0.000000e+00 : f32
    %10 = vector.broadcast %cst_7 : f32 to vector<1x1x18x16xf32>
    %cst_8 = arith.constant 0.000000e+00 : f32
    %11 = vector.broadcast %cst_8 : f32 to vector<1x16x1x16xf32>
    %c0_9 = arith.constant 0 : index
    %c0_10 = arith.constant 0 : index
    %c0_11 = arith.constant 0 : index
    %c0_12 = arith.constant 0 : index
    %12 = vector.load %arg6[%c0_9, %c0_10, %c0_11, %c0_12] : memref<1x18x18x16xf32, #tpu.memory_space<vmem>>, vector<1x1x18x16xf32>
    tpu.vector_store %arg6[%c0_9, %c0_10, %c0_11, %c0_12], %10 {strides = array<i32>} : memref<1x18x18x16xf32, #tpu.memory_space<vmem>>, vector<1x1x18x16xf32>,
    %c0_13 = arith.constant 0 : index
    %c17 = arith.constant 17 : index
    %c0_14 = arith.constant 0 : index
    %c0_15 = arith.constant 0 : index
    %13 = vector.load %arg6[%c0_13, %c17, %c0_14, %c0_15] : memref<1x18x18x16xf32, #tpu.memory_space<vmem>>, vector<1x1x18x16xf32>
    tpu.vector_store %arg6[%c0_13, %c17, %c0_14, %c0_15], %10 {strides = array<i32>} : memref<1x18x18x16xf32, #tpu.memory_space<vmem>>, vector<1x1x18x16xf32>,
    %c0_16 = arith.constant 0 : index
    %c1 = arith.constant 1 : index
    %c0_17 = arith.constant 0 : index
    %c0_18 = arith.constant 0 : index
    %14 = vector.load %arg6[%c0_16, %c1, %c0_17, %c0_18] : memref<1x18x18x16xf32, #tpu.memory_space<vmem>>, vector<1x16x1x16xf32>
    tpu.vector_store %arg6[%c0_16, %c1, %c0_17, %c0_18], %11 {strides = array<i32>} : memref<1x18x18x16xf32, #tpu.memory_space<vmem>>, vector<1x16x1x16xf32>,
    %c0_19 = arith.constant 0 : index
    %c1_20 = arith.constant 1 : index
    %c17_21 = arith.constant 17 : index
    %c0_22 = arith.constant 0 : index
    %15 = vector.load %arg6[%c0_19, %c1_20, %c17_21, %c0_22] : memref<1x18x18x16xf32, #tpu.memory_space<vmem>>, vector<1x16x1x16xf32>
    tpu.vector_store %arg6[%c0_19, %c1_20, %c17_21, %c0_22], %11 {strides = array<i32>} : memref<1x18x18x16xf32, #tpu.memory_space<vmem>>, vector<1x16x1x16xf32>,
    %16 = vector.shape_cast %9 : vector<256x16xf32> to vector<1x16x16x16xf32>
    %c0_23 = arith.constant 0 : index
    %c1_24 = arith.constant 1 : index
    %c1_25 = arith.constant 1 : index
    %c0_26 = arith.constant 0 : index
    %17 = vector.load %arg6[%c0_23, %c1_24, %c1_25, %c0_26] : memref<1x18x18x16xf32, #tpu.memory_space<vmem>>, vector<1x16x16x16xf32>
    tpu.vector_store %arg6[%c0_23, %c1_24, %c1_25, %c0_26], %16 {strides = array<i32>} : memref<1x18x18x16xf32, #tpu.memory_space<vmem>>, vector<1x16x16x16xf32>,
    %c0_27 = arith.constant 0 : index
    %c0_28 = arith.constant 0 : index
    %c0_29 = arith.constant 0 : index
    %c0_30 = arith.constant 0 : index
    %18 = vector.load %arg6[%c0_27, %c0_28, %c0_29, %c0_30] : memref<1x18x18x16xf32, #tpu.memory_space<vmem>>, vector<1x16x16x16xf32>
    %19 = vector.shape_cast %18 : vector<1x16x16x16xf32> to vector<256x16xf32>
    %c0_31 = arith.constant 0 : index
    %c0_32 = arith.constant 0 : index
    %20 = vector.load %arg7[%c0_31, %c0_32] : memref<256x144xf32, #tpu.memory_space<vmem>>, vector<256x16xf32>
    tpu.vector_store %arg7[%c0_31, %c0_32], %19 {strides = array<i32>} : memref<256x144xf32, #tpu.memory_space<vmem>>, vector<256x16xf32>,
    %c0_33 = arith.constant 0 : index
    %c0_34 = arith.constant 0 : index
    %c1_35 = arith.constant 1 : index
    %c0_36 = arith.constant 0 : index
    %21 = vector.load %arg6[%c0_33, %c0_34, %c1_35, %c0_36] : memref<1x18x18x16xf32, #tpu.memory_space<vmem>>, vector<1x16x16x16xf32>
    %22 = vector.shape_cast %21 : vector<1x16x16x16xf32> to vector<256x16xf32>
    %c0_37 = arith.constant 0 : index
    %c16 = arith.constant 16 : index
    %23 = vector.load %arg7[%c0_37, %c16] : memref<256x144xf32, #tpu.memory_space<vmem>>, vector<256x16xf32>
    tpu.vector_store %arg7[%c0_37, %c16], %22 {strides = array<i32>} : memref<256x144xf32, #tpu.memory_space<vmem>>, vector<256x16xf32>,
    %c0_38 = arith.constant 0 : index
    %c0_39 = arith.constant 0 : index
    %c2 = arith.constant 2 : index
    %c0_40 = arith.constant 0 : index
    %24 = vector.load %arg6[%c0_38, %c0_39, %c2, %c0_40] : memref<1x18x18x16xf32, #tpu.memory_space<vmem>>, vector<1x16x16x16xf32>
    %25 = vector.shape_cast %24 : vector<1x16x16x16xf32> to vector<256x16xf32>
    %c0_41 = arith.constant 0 : index
    %c32 = arith.constant 32 : index
    %26 = vector.load %arg7[%c0_41, %c32] : memref<256x144xf32, #tpu.memory_space<vmem>>, vector<256x16xf32>
    tpu.vector_store %arg7[%c0_41, %c32], %25 {strides = array<i32>} : memref<256x144xf32, #tpu.memory_space<vmem>>, vector<256x16xf32>,
    %c0_42 = arith.constant 0 : index
    %c1_43 = arith.constant 1 : index
    %c0_44 = arith.constant 0 : index
    %c0_45 = arith.constant 0 : index
    %27 = vector.load %arg6[%c0_42, %c1_43, %c0_44, %c0_45] : memref<1x18x18x16xf32, #tpu.memory_space<vmem>>, vector<1x16x16x16xf32>
    %28 = vector.shape_cast %27 : vector<1x16x16x16xf32> to vector<256x16xf32>
    %c0_46 = arith.constant 0 : index
    %c48 = arith.constant 48 : index
    %29 = vector.load %arg7[%c0_46, %c48] : memref<256x144xf32, #tpu.memory_space<vmem>>, vector<256x16xf32>
    tpu.vector_store %arg7[%c0_46, %c48], %28 {strides = array<i32>} : memref<256x144xf32, #tpu.memory_space<vmem>>, vector<256x16xf32>,
    %c0_47 = arith.constant 0 : index
    %c1_48 = arith.constant 1 : index
    %c1_49 = arith.constant 1 : index
    %c0_50 = arith.constant 0 : index
    %30 = vector.load %arg6[%c0_47, %c1_48, %c1_49, %c0_50] : memref<1x18x18x16xf32, #tpu.memory_space<vmem>>, vector<1x16x16x16xf32>
    %31 = vector.shape_cast %30 : vector<1x16x16x16xf32> to vector<256x16xf32>
    %c0_51 = arith.constant 0 : index
    %c64 = arith.constant 64 : index
    %32 = vector.load %arg7[%c0_51, %c64] : memref<256x144xf32, #tpu.memory_space<vmem>>, vector<256x16xf32>
    tpu.vector_store %arg7[%c0_51, %c64], %31 {strides = array<i32>} : memref<256x144xf32, #tpu.memory_space<vmem>>, vector<256x16xf32>,
    %c0_52 = arith.constant 0 : index
    %c1_53 = arith.constant 1 : index
    %c2_54 = arith.constant 2 : index
    %c0_55 = arith.constant 0 : index
    %33 = vector.load %arg6[%c0_52, %c1_53, %c2_54, %c0_55] : memref<1x18x18x16xf32, #tpu.memory_space<vmem>>, vector<1x16x16x16xf32>
    %34 = vector.shape_cast %33 : vector<1x16x16x16xf32> to vector<256x16xf32>
    %c0_56 = arith.constant 0 : index
    %c80 = arith.constant 80 : index
    %35 = vector.load %arg7[%c0_56, %c80] : memref<256x144xf32, #tpu.memory_space<vmem>>, vector<256x16xf32>
    tpu.vector_store %arg7[%c0_56, %c80], %34 {strides = array<i32>} : memref<256x144xf32, #tpu.memory_space<vmem>>, vector<256x16xf32>,
    %c0_57 = arith.constant 0 : index
    %c2_58 = arith.constant 2 : index
    %c0_59 = arith.constant 0 : index
    %c0_60 = arith.constant 0 : index
    %36 = vector.load %arg6[%c0_57, %c2_58, %c0_59, %c0_60] : memref<1x18x18x16xf32, #tpu.memory_space<vmem>>, vector<1x16x16x16xf32>
    %37 = vector.shape_cast %36 : vector<1x16x16x16xf32> to vector<256x16xf32>
    %c0_61 = arith.constant 0 : index
    %c96 = arith.constant 96 : index
    %38 = vector.load %arg7[%c0_61, %c96] : memref<256x144xf32, #tpu.memory_space<vmem>>, vector<256x16xf32>
    tpu.vector_store %arg7[%c0_61, %c96], %37 {strides = array<i32>} : memref<256x144xf32, #tpu.memory_space<vmem>>, vector<256x16xf32>,
    %c0_62 = arith.constant 0 : index
    %c2_63 = arith.constant 2 : index
    %c1_64 = arith.constant 1 : index
    %c0_65 = arith.constant 0 : index
    %39 = vector.load %arg6[%c0_62, %c2_63, %c1_64, %c0_65] : memref<1x18x18x16xf32, #tpu.memory_space<vmem>>, vector<1x16x16x16xf32>
    %40 = vector.shape_cast %39 : vector<1x16x16x16xf32> to vector<256x16xf32>
    %c0_66 = arith.constant 0 : index
    %c112 = arith.constant 112 : index
    %41 = vector.load %arg7[%c0_66, %c112] : memref<256x144xf32, #tpu.memory_space<vmem>>, vector<256x16xf32>
    tpu.vector_store %arg7[%c0_66, %c112], %40 {strides = array<i32>} : memref<256x144xf32, #tpu.memory_space<vmem>>, vector<256x16xf32>,
    %c0_67 = arith.constant 0 : index
    %c2_68 = arith.constant 2 : index
    %c2_69 = arith.constant 2 : index
    %c0_70 = arith.constant 0 : index
    %42 = vector.load %arg6[%c0_67, %c2_68, %c2_69, %c0_70] : memref<1x18x18x16xf32, #tpu.memory_space<vmem>>, vector<1x16x16x16xf32>
    %43 = vector.shape_cast %42 : vector<1x16x16x16xf32> to vector<256x16xf32>
    %c0_71 = arith.constant 0 : index
    %c128 = arith.constant 128 : index
    %44 = vector.load %arg7[%c0_71, %c128] : memref<256x144xf32, #tpu.memory_space<vmem>>, vector<256x16xf32>
    tpu.vector_store %arg7[%c0_71, %c128], %43 {strides = array<i32>} : memref<256x144xf32, #tpu.memory_space<vmem>>, vector<256x16xf32>,
    %c0_72 = arith.constant 0 : index
    %c0_73 = arith.constant 0 : index
    %45 = vector.load %arg7[%c0_72, %c0_73] : memref<256x144xf32, #tpu.memory_space<vmem>>, vector<256x144xf32>
    %c0_74 = arith.constant 0 : index
    %c0_75 = arith.constant 0 : index
    %46 = vector.load %arg4[%c0_74, %c0_75] : memref<144x32xf32, #tpu.memory_space<vmem>>, vector<144x32xf32>
    %cst_76 = arith.constant dense<0.000000e+00> : vector<256x32xf32>
    %47 = tpu.matmul %45, %46, %cst_76 {dimension_numbers = #tpu.dot_dimension_numbers<[1], [0], [0], [1], [0, 0, 1, 1], [], []>} : vector<256x144xf32>, vector<144x32xf32>, vector<256x32xf32> -> vector<256x32xf32>
    %48 = vector.shape_cast %47 : vector<256x32xf32> to vector<1x16x16x32xf32>
    %c0_77 = arith.constant 0 : index
    %c0_78 = arith.constant 0 : index
    %c0_79 = arith.constant 0 : index
    %c0_80 = arith.constant 0 : index
    %49 = vector.load %arg5[%c0_77, %c0_78, %c0_79, %c0_80] : memref<1x16x16x32xf32, #tpu.memory_space<vmem>>, vector<1x16x16x32xf32>
    tpu.vector_store %arg5[%c0_77, %c0_78, %c0_79, %c0_80], %48 {strides = array<i32>} : memref<1x16x16x32xf32, #tpu.memory_space<vmem>>, vector<1x16x16x32xf32>,
    return
  }
  func.func @transform_0(%arg0: i32) -> (i32, i32, i32, i32) {
    %c0_i32 = arith.constant 0 : i32
    %c0_i32_0 = arith.constant 0 : i32
    %c0_i32_1 = arith.constant 0 : i32
    %c0_i32_2 = arith.constant 0 : i32
    return %arg0, %c0_i32, %c0_i32_0, %c0_i32_1 : i32, i32, i32, i32
  }
  func.func @transform_1(%arg0: i32) -> (i32, i32) {
    %c0_i32 = arith.constant 0 : i32
    %c0_i32_0 = arith.constant 0 : i32
    %c0_i32_1 = arith.constant 0 : i32
    return %c0_i32, %c0_i32_0 : i32, i32
  }
  func.func @transform_2(%arg0: i32) -> (i32, i32) {
    %c0_i32 = arith.constant 0 : i32
    %c0_i32_0 = arith.constant 0 : i32
    %c0_i32_1 = arith.constant 0 : i32
    return %c0_i32, %c0_i32_0 : i32, i32
  }
  func.func @transform_3(%arg0: i32) -> (i32, i32) {
    %c0_i32 = arith.constant 0 : i32
    %c0_i32_0 = arith.constant 0 : i32
    %c0_i32_1 = arith.constant 0 : i32
    return %c0_i32, %c0_i32_0 : i32, i32
  }
  func.func @transform_4(%arg0: i32) -> (i32, i32, i32, i32) {
    %c0_i32 = arith.constant 0 : i32
    %c0_i32_0 = arith.constant 0 : i32
    %c0_i32_1 = arith.constant 0 : i32
    %c0_i32_2 = arith.constant 0 : i32
    return %arg0, %c0_i32, %c0_i32_0, %c0_i32_1 : i32, i32, i32, i32
  }
}

</mosaic_0001>

<llo_original>
// kernel: mnist_block_forward.1
$region0: #{mnist_block_forward.1}
  #allocation0 [shape = 'u32[]', space=smem, size = 0x4, offset = 0x4, fixed_abs, tag = 'smem constant byte address 0x4 - core index']
  #allocation1 [shape = 'u32[72,128]{1,0:T(1,128)}', space=vmem, size = 0x9000, scoped, tag = 'internal scratch']
  #allocation2 [shape = 'f32[1,18,18,16]{3,2,1,0:T(8,128)}', space=vmem, size = 0x36000, scoped, tag = 'scratch operand']
  #allocation3 [shape = 'f32[256,144]{1,0:T(8,128)}', space=vmem, size = 0x40000, scoped, tag = 'scratch operand']
  %s0 = inlined_call_operand.vmem [shape: f32[2,16,16,16], index: 0, kind: input, shape index: {}]
  %s1 = inlined_call_operand.vmem [shape: f32[1,16], index: 1, kind: input, shape index: {}]
  %s2 = inlined_call_operand.vmem [shape: f32[1,16], index: 2, kind: input, shape index: {}]
  %s3 = inlined_call_operand.vmem [shape: f32[144,32], index: 3, kind: input, shape index: {}]
  %s4 = inlined_call_operand.hbm [shape: f32[2,16,16,32], index: 4, kind: output, shape index: {}]
  %s5 = sld [smem:[#allocation0]]
  $region49: #{mnist_block_forward.1} parent=0
    _
  %s7 = ssub.s32 1, %s5
  %s8 = scalar_select 0, %s7, %s5
  $region1: #{mnist_block_forward.1} parent=0
    #allocation4 [shape = 'u8[262144]{0}', space=vmem, size = 0x40000, scoped, tag = 'output window, operand 0']
    #allocation5 [shape = 's32[2]{0}', space=sflag, size = 0x8, scoped, tag = 'scoped memory for mnist_block_forward.1']
    %9 = vsyncpa [#allocation5], 0
    %s10 = scalar_lea.sflag [#allocation5], 1
    %11 = vsyncpa %s10, 0
    loop: start=0, step=1, limit=4
    $region2: #{mnist_block_forward.1} parent=1 // loop_pre_header
      _
    $region3: #{mnist_block_forward.1} parent=1 // loop_header
      %s13 = sphi 0, %s17
      %p14 = scmp.ge.s32.totalorder %s13, 4
      %s23 = sphi 0, %s25
      %s26 = sphi 0, %s23
      %s27 = sphi 0, %s26
      %s43 = sphi 0, %s27
      %s47 = sphi 0, %s47
      %s49 = sphi 0, %s47
      %s50 = sphi 0, %s49
      %s64 = sphi 0, %s50
      %s68 = sphi 0, %s68
      %s70 = sphi 0, %s68
      %s71 = sphi 0, %s70
      %s85 = sphi 0, %s71
      %s89 = sphi 0, %s89
      %s91 = sphi 0, %s89
      %s92 = sphi 0, %s91
      %s106 = sphi 0, %s92
      %s112 = sphi 0, %s114
      %s115 = sphi 0, %s112
      %s116 = sphi 0, %s115
      %s132 = sphi 0, %s116
    $region4: #{mnist_block_forward.1} parent=1 // loop_header_branch
      %16 = sbr.rel (%p14) target = $region8
    $region5: #{mnist_block_forward.1} parent=1 // loop_body
      %s18 = ssub.s32 %s13, 1
      %s19 = ssub.s32 %s13, 2
      %s20 = sadd.s32 %s13, 1
      %s21 = ssub.s32 %s13, %s20
      %p22 = scmp.eq.s32.totalorder %s21, 0
      %s24 = sadd.s32 %s23, 1
      %s25 = scalar_select %p22, %s23, %s24
      %p28 = pneg %p22
      %p29 = scmp.eq.s32.totalorder %s13, 1
      %p30 = por %p28, %p29
      %p31 = scmp.ne.s32.totalorder %s23, %s26
      %p32 = scmp.eq.s32.totalorder %s13, 0
      %p33 = por %p31, %p32
      %p34 = scmp.ne.s32.totalorder %s23, %s26
      %p35 = scmp.eq.s32.totalorder %s18, 1
      %p36 = por %p34, %p35
      %p37 = scmp.ne.s32.totalorder %s26, %s27
      %p38 = scmp.eq.s32.totalorder %s18, 0
      %p39 = por %p37, %p38
      %p40 = scmp.ne.s32.totalorder %s26, %s27
      %p41 = scmp.eq.s32.totalorder %s19, 1
      %p42 = por %p40, %p41
      %p44 = scmp.ne.s32.totalorder %s27, %s43
      %p45 = scmp.eq.s32.totalorder %s19, 0
      %p46 = por %p44, %p45
      %s48 = sadd.s32 %s47, 1
      %p51 = scmp.eq.s32.totalorder %s13, 1
      %p52 = scmp.ne.s32.totalorder %s47, %s49
      %p53 = scmp.eq.s32.totalorder %s13, 0
      %p54 = por %p52, %p53
      %p55 = scmp.ne.s32.totalorder %s47, %s49
      %p56 = scmp.eq.s32.totalorder %s18, 1
      %p57 = por %p55, %p56
      %p58 = scmp.ne.s32.totalorder %s49, %s50
      %p59 = scmp.eq.s32.totalorder %s18, 0
      %p60 = por %p58, %p59
      %p61 = scmp.ne.s32.totalorder %s49, %s50
      %p62 = scmp.eq.s32.totalorder %s19, 1
      %p63 = por %p61, %p62
      %p65 = scmp.ne.s32.totalorder %s50, %s64
      %p66 = scmp.eq.s32.totalorder %s19, 0
      %p67 = por %p65, %p66
      %s69 = sadd.s32 %s68, 1
      %p72 = scmp.eq.s32.totalorder %s13, 1
      %p73 = scmp.ne.s32.totalorder %s68, %s70
      %p74 = scmp.eq.s32.totalorder %s13, 0
      %p75 = por %p73, %p74
      %p76 = scmp.ne.s32.totalorder %s68, %s70
      %p77 = scmp.eq.s32.totalorder %s18, 1
      %p78 = por %p76, %p77
      %p79 = scmp.ne.s32.totalorder %s70, %s71
      %p80 = scmp.eq.s32.totalorder %s18, 0
      %p81 = por %p79, %p80
      %p82 = scmp.ne.s32.totalorder %s70, %s71
      %p83 = scmp.eq.s32.totalorder %s19, 1
      %p84 = por %p82, %p83
      %p86 = scmp.ne.s32.totalorder %s71, %s85
      %p87 = scmp.eq.s32.totalorder %s19, 0
      %p88 = por %p86, %p87
      %s90 = sadd.s32 %s89, 1
      %p93 = scmp.eq.s32.totalorder %s13, 1
      %p94 = scmp.ne.s32.totalorder %s89, %s91
      %p95 = scmp.eq.s32.totalorder %s13, 0
      %p96 = por %p94, %p95
      %p97 = scmp.ne.s32.totalorder %s89, %s91
      %p98 = scmp.eq.s32.totalorder %s18, 1
      %p99 = por %p97, %p98
      %p100 = scmp.ne.s32.totalorder %s91, %s92
      %p101 = scmp.eq.s32.totalorder %s18, 0
      %p102 = por %p100, %p101
      %p103 = scmp.ne.s32.totalorder %s91, %s92
      %p104 = scmp.eq.s32.totalorder %s19, 1
      %p105 = por %p103, %p104
      %p107 = scmp.ne.s32.totalorder %s92, %s106
      %p108 = scmp.eq.s32.totalorder %s19, 0
      %p109 = por %p107, %p108
      %s110 = ssub.s32 %s13, %s20
      %p111 = scmp.eq.s32.totalorder %s110, 0
      %s113 = sadd.s32 %s112, 1
      %s114 = scalar_select %p111, %s112, %s113
      %p117 = pneg %p111
      %p118 = scmp.eq.s32.totalorder %s13, 1
      %p119 = por %p117, %p118
      %p120 = scmp.ne.s32.totalorder %s112, %s115
      %p121 = scmp.eq.s32.totalorder %s13, 0
      %p122 = por %p120, %p121
      %p123 = scmp.ne.s32.totalorder %s112, %s115
      %p124 = scmp.eq.s32.totalorder %s18, 1
      %p125 = por %p123, %p124
      %p126 = scmp.ne.s32.totalorder %s115, %s116
      %p127 = scmp.eq.s32.totalorder %s18, 0
      %p128 = por %p126, %p127
      %p129 = scmp.ne.s32.totalorder %s115, %s116
      %p130 = scmp.eq.s32.totalorder %s19, 1
      %p131 = por %p129, %p130
      %p133 = scmp.ne.s32.totalorder %s116, %s132
      %p134 = scmp.eq.s32.totalorder %s19, 0
      %p135 = por %p133, %p134
      %p136 = scmp.le.s32.totalorder 1, %s13
      %p137 = scmp.lt.s32.totalorder %s13, 3
      %p138 = pnand %p136, %p137
      %p139 = pneg %p138
      // Predicated region
      $region9: #{mnist_block_forward.1} parent=5 // pred_check
        _
      $region10: #{mnist_block_forward.1} parent=5 // pred_check_branch
        %141 = sbr.rel (%p138) target = $region12
      $region11: #{mnist_block_forward.1} parent=5 // pred_region
        %s142 = ssub.s32 %s13, 1
        // Predicated region
        $region13: #{mnist_block_forward.1} parent=11 // pred_check
          %p143 = pneg %p60
        $region14: #{mnist_block_forward.1} parent=11 // pred_check_branch
          %145 = sbr.rel (%p143) target = $region16
        $region15: #{mnist_block_forward.1} parent=11 // pred_region
          _
        $region16: #{mnist_block_forward.1} parent=11 // pred_fallthru
          _
        // Predicated region
        $region17: #{mnist_block_forward.1} parent=11 // pred_check
          %p146 = pneg %p81
        $region18: #{mnist_block_forward.1} parent=11 // pred_check_branch
          %148 = sbr.rel (%p146) target = $region20
        $region19: #{mnist_block_forward.1} parent=11 // pred_region
          _
        $region20: #{mnist_block_forward.1} parent=11 // pred_fallthru
          _
        // Predicated region
        $region21: #{mnist_block_forward.1} parent=11 // pred_check
          %p149 = pneg %p102
        $region22: #{mnist_block_forward.1} parent=11 // pred_check_branch
          %151 = sbr.rel (%p149) target = $region24
        $region23: #{mnist_block_forward.1} parent=11 // pred_region
          _
        $region24: #{mnist_block_forward.1} parent=11 // pred_fallthru
          _
      $region12: #{mnist_block_forward.1} parent=5 // pred_fallthru
        _
      %p152 = scmp.lt.s32.totalorder %s13, 2
      // Predicated region
      $region25: #{mnist_block_forward.1} parent=5 // pred_check
        %p153 = pneg %p152
      $region26: #{mnist_block_forward.1} parent=5 // pred_check_branch
        %155 = sbr.rel (%p153) target = $region28
      $region27: #{mnist_block_forward.1} parent=5 // pred_region
        // Predicated region
        $region29: #{mnist_block_forward.1} parent=27 // pred_check
          %p156 = pneg %p33
        $region30: #{mnist_block_forward.1} parent=27 // pred_check_branch
          %158 = sbr.rel (%p156) target = $region32
        $region31: #{mnist_block_forward.1} parent=27 // pred_region
          %p159 = scmp.lt.s32.totalorder %s13, 1
          %s160 = scalar_select %p159, %s13, 1
          %s161 = smul.addr %s160, 32
          %s162 = smul.addr %s161, 8
          %s163 = scalar_lea.vmem %s0, %s162
        $region32: #{mnist_block_forward.1} parent=27 // pred_fallthru
          _
      $region28: #{mnist_block_forward.1} parent=5 // pred_fallthru
        _
      %p164 = scmp.le.s32.totalorder 1, %s13
      %p165 = scmp.lt.s32.totalorder %s13, 3
      %p166 = pnand %p164, %p165
      %p167 = pneg %p166
      // Predicated region
      $region33: #{mnist_block_forward.1} parent=5 // pred_check
        _
      $region34: #{mnist_block_forward.1} parent=5 // pred_check_branch
        %169 = sbr.rel (%p166) target = $region36
      $region35: #{mnist_block_forward.1} parent=5 // pred_region
        %s170 = ssub.s32 %s13, 1
        %p171 = scmp.lt.s32.totalorder %s18, 1
        %s172 = scalar_select %p171, %s18, 1
        %s173 = smul.addr %s172, 32
        %s174 = smul.addr %s173, 8
        %s175 = scalar_lea.vmem %s0, %s174
        %p176 = pneg %p39
        %p177 = pneg %p36
        %p178 = pneg %p60
        %p179 = pneg %p57
        %p180 = pneg %p81
        %p181 = pneg %p78
        %p182 = pneg %p102
        %p183 = pneg %p99
        %p184 = pneg %p128
        %p185 = pneg %p125
        %s186 = sand.u32 %s115, 1
        %s187 = scalar_lea.sflag [#allocation5], %s186
        %s188 = sand.u32 %s115, 1
        %s189 = smul.addr %s188, 256
        %s190 = scalar_lea.vmem [#allocation4], %s189
        %p191 = scmp.lt.s32.totalorder %s18, 1
        %s192 = scalar_select %p191, %s18, 1
        %s193 = smul.addr %s192, 32
        %s194 = smul.addr %s193, 8
        %s195 = scalar_lea.vmem %s0, %s194
        %v196 = vld [vmem:[%s195] sm:$0xff]
        %v197 = vld [vmem:[%s195 + $0x8] sm:$0xff]
        %v198 = vld [vmem:[%s195 + $0x10] sm:$0xff]
        %v199 = vld [vmem:[%s195 + $0x18] sm:$0xff]
        %v200 = vld [vmem:[%s195 + $0x20] sm:$0xff]
        %v201 = vld [vmem:[%s195 + $0x28] sm:$0xff]
        %v202 = vld [vmem:[%s195 + $0x30] sm:$0xff]
        %v203 = vld [vmem:[%s195 + $0x38] sm:$0xff]
        %v204 = vld [vmem:[%s195 + $0x40] sm:$0xff]
        %v205 = vld [vmem:[%s195 + $0x48] sm:$0xff]
        %v206 = vld [vmem:[%s195 + $0x50] sm:$0xff]
        %v207 = vld [vmem:[%s195 + $0x58] sm:$0xff]
        %v208 = vld [vmem:[%s195 + $0x60] sm:$0xff]
        %v209 = vld [vmem:[%s195 + $0x68] sm:$0xff]
        %v210 = vld [vmem:[%s195 + $0x70] sm:$0xff]
        %v211 = vld [vmem:[%s195 + $0x78] sm:$0xff]
        %v212 = vld [vmem:[%s195 + $0x80] sm:$0xff]
        %v213 = vld [vmem:[%s195 + $0x88] sm:$0xff]
        %v214 = vld [vmem:[%s195 + $0x90] sm:$0xff]
        %v215 = vld [vmem:[%s195 + $0x98] sm:$0xff]
        %v216 = vld [vmem:[%s195 + $0xa0] sm:$0xff]
        %v217 = vld [vmem:[%s195 + $0xa8] sm:$0xff]
        %v218 = vld [vmem:[%s195 + $0xb0] sm:$0xff]
        %v219 = vld [vmem:[%s195 + $0xb8] sm:$0xff]
        %v220 = vld [vmem:[%s195 + $0xc0] sm:$0xff]
        %v221 = vld [vmem:[%s195 + $0xc8] sm:$0xff]
        %v222 = vld [vmem:[%s195 + $0xd0] sm:$0xff]
        %v223 = vld [vmem:[%s195 + $0xd8] sm:$0xff]
        %v224 = vld [vmem:[%s195 + $0xe0] sm:$0xff]
        %v225 = vld [vmem:[%s195 + $0xe8] sm:$0xff]
        %v226 = vld [vmem:[%s195 + $0xf0] sm:$0xff]
        %v227 = vld [vmem:[%s195 + $0xf8] sm:$0xff]
        %v228 = vld [vmem:[%s1] sm:$0x1]
        %v230 = vperm.slane %v228, 0
        %v232 = vmul.f32 %v196, %v230
        %v233 = vmul.f32 %v197, %v230
        %v234 = vmul.f32 %v198, %v230
        %v235 = vmul.f32 %v199, %v230
        %v236 = vmul.f32 %v200, %v230
        %v237 = vmul.f32 %v201, %v230
        %v238 = vmul.f32 %v202, %v230
        %v239 = vmul.f32 %v203, %v230
        %v240 = vmul.f32 %v204, %v230
        %v241 = vmul.f32 %v205, %v230
        %v242 = vmul.f32 %v206, %v230
        %v243 = vmul.f32 %v207, %v230
        %v244 = vmul.f32 %v208, %v230
        %v245 = vmul.f32 %v209, %v230
        %v246 = vmul.f32 %v210, %v230
        %v247 = vmul.f32 %v211, %v230
        %v248 = vmul.f32 %v212, %v230
        %v249 = vmul.f32 %v213, %v230
        %v250 = vmul.f32 %v214, %v230
        %v251 = vmul.f32 %v215, %v230
        %v252 = vmul.f32 %v216, %v230
        %v253 = vmul.f32 %v217, %v230
        %v254 = vmul.f32 %v218, %v230
        %v255 = vmul.f32 %v219, %v230
        %v256 = vmul.f32 %v220, %v230
        %v257 = vmul.f32 %v221, %v230
        %v258 = vmul.f32 %v222, %v230
        %v259 = vmul.f32 %v223, %v230
        %v260 = vmul.f32 %v224, %v230
        %v261 = vmul.f32 %v225, %v230
        %v262 = vmul.f32 %v226, %v230
        %v263 = vmul.f32 %v227, %v230
        %v264 = vld [vmem:[%s2] sm:$0x1]
        %v266 = vperm.slane %v264, 0
        %v268 = vadd.f32 %v232, %v266
        %v269 = vadd.f32 %v233, %v266
        %v270 = vadd.f32 %v234, %v266
        %v271 = vadd.f32 %v235, %v266
        %v272 = vadd.f32 %v236, %v266
        %v273 = vadd.f32 %v237, %v266
        %v274 = vadd.f32 %v238, %v266
        %v275 = vadd.f32 %v239, %v266
        %v276 = vadd.f32 %v240, %v266
        %v277 = vadd.f32 %v241, %v266
        %v278 = vadd.f32 %v242, %v266
        %v279 = vadd.f32 %v243, %v266
        %v280 = vadd.f32 %v244, %v266
        %v281 = vadd.f32 %v245, %v266
        %v282 = vadd.f32 %v246, %v266
        %v283 = vadd.f32 %v247, %v266
        %v284 = vadd.f32 %v248, %v266
        %v285 = vadd.f32 %v249, %v266
        %v286 = vadd.f32 %v250, %v266
        %v287 = vadd.f32 %v251, %v266
        %v288 = vadd.f32 %v252, %v266
        %v289 = vadd.f32 %v253, %v266
        %v290 = vadd.f32 %v254, %v266
        %v291 = vadd.f32 %v255, %v266
        %v292 = vadd.f32 %v256, %v266
        %v293 = vadd.f32 %v257, %v266
        %v294 = vadd.f32 %v258, %v266
        %v295 = vadd.f32 %v259, %v266
        %v296 = vadd.f32 %v260, %v266
        %v297 = vadd.f32 %v261, %v266
        %v298 = vadd.f32 %v262, %v266
        %v299 = vadd.f32 %v263, %v266
        %v300 = vmax.f32 %v268, 0.0
        %v301 = vmax.f32 %v269, 0.0
        %v302 = vmax.f32 %v270, 0.0
        %v303 = vmax.f32 %v271, 0.0
        %v304 = vmax.f32 %v272, 0.0
        %v305 = vmax.f32 %v273, 0.0
        %v306 = vmax.f32 %v274, 0.0
        %v307 = vmax.f32 %v275, 0.0
        %v308 = vmax.f32 %v276, 0.0
        %v309 = vmax.f32 %v277, 0.0
        %v310 = vmax.f32 %v278, 0.0
        %v311 = vmax.f32 %v279, 0.0
        %v312 = vmax.f32 %v280, 0.0
        %v313 = vmax.f32 %v281, 0.0
        %v314 = vmax.f32 %v282, 0.0
        %v315 = vmax.f32 %v283, 0.0
        %v316 = vmax.f32 %v284, 0.0
        %v317 = vmax.f32 %v285, 0.0
        %v318 = vmax.f32 %v286, 0.0
        %v319 = vmax.f32 %v287, 0.0
        %v320 = vmax.f32 %v288, 0.0
        %v321 = vmax.f32 %v289, 0.0
        %v322 = vmax.f32 %v290, 0.0
        %v323 = vmax.f32 %v291, 0.0
        %v324 = vmax.f32 %v292, 0.0
        %v325 = vmax.f32 %v293, 0.0
        %v326 = vmax.f32 %v294, 0.0
        %v327 = vmax.f32 %v295, 0.0
        %v328 = vmax.f32 %v296, 0.0
        %v329 = vmax.f32 %v297, 0.0
        %v330 = vmax.f32 %v298, 0.0
        %v331 = vmax.f32 %v299, 0.0
        %vm332 = vcmask 130048
        %333 = vst.msk [vmem:[#allocation2] sm:$0xff] %vm332, 0.0
        %334 = vst.msk [vmem:[#allocation2 + $0x8] sm:$0xff] %vm332, 0.0
        %vm335 = vcmask 123904
        %336 = vst.msk [vmem:[#allocation2 + $0x10] sm:$0x3] %vm335, 0.0
        %s337 = scalar_lea.vmem [#allocation2], 408
        %338 = vst.msk [vmem:[%s337] sm:$0xff] %vm332, 0.0
        %339 = vst.msk [vmem:[%s337 + $0x8] sm:$0xff] %vm332, 0.0
        %340 = vst.msk [vmem:[%s337 + $0x10] sm:$0x3] %vm335, 0.0
        %s341 = scalar_lea.vmem [#allocation2], 24
        %vm342 = vcmask 122880
        %343 = vst.msk [vmem:[%s341] sm:$0x1] %vm342, 0.0
        %344 = vst.msk [vmem:[%s341 + $0x18] sm:$0x1] %vm342, 0.0
        %345 = vst.msk [vmem:[%s341 + $0x30] sm:$0x1] %vm342, 0.0
        %346 = vst.msk [vmem:[%s341 + $0x48] sm:$0x1] %vm342, 0.0
        %347 = vst.msk [vmem:[%s341 + $0x60] sm:$0x1] %vm342, 0.0
        %348 = vst.msk [vmem:[%s341 + $0x78] sm:$0x1] %vm342, 0.0
        %349 = vst.msk [vmem:[%s341 + $0x90] sm:$0x1] %vm342, 0.0
        %350 = vst.msk [vmem:[%s341 + $0xa8] sm:$0x1] %vm342, 0.0
        %351 = vst.msk [vmem:[%s341 + $0xc0] sm:$0x1] %vm342, 0.0
        %352 = vst.msk [vmem:[%s341 + $0xd8] sm:$0x1] %vm342, 0.0
        %353 = vst.msk [vmem:[%s341 + $0xf0] sm:$0x1] %vm342, 0.0
        %354 = vst.msk [vmem:[%s341 + $0x108] sm:$0x1] %vm342, 0.0
        %355 = vst.msk [vmem:[%s341 + $0x120] sm:$0x1] %vm342, 0.0
        %356 = vst.msk [vmem:[%s341 + $0x138] sm:$0x1] %vm342, 0.0
        %357 = vst.msk [vmem:[%s341 + $0x150] sm:$0x1] %vm342, 0.0
        %358 = vst.msk [vmem:[%s341 + $0x168] sm:$0x1] %vm342, 0.0
        %359 = vst.msk [vmem:[%s341 + $0x11] sm:$0x1] %vm342, 0.0
        %360 = vst.msk [vmem:[%s341 + $0x29] sm:$0x1] %vm342, 0.0
        %361 = vst.msk [vmem:[%s341 + $0x41] sm:$0x1] %vm342, 0.0
        %362 = vst.msk [vmem:[%s341 + $0x59] sm:$0x1] %vm342, 0.0
        %363 = vst.msk [vmem:[%s341 + $0x71] sm:$0x1] %vm342, 0.0
        %364 = vst.msk [vmem:[%s341 + $0x89] sm:$0x1] %vm342, 0.0
        %365 = vst.msk [vmem:[%s341 + $0xa1] sm:$0x1] %vm342, 0.0
        %366 = vst.msk [vmem:[%s341 + $0xb9] sm:$0x1] %vm342, 0.0
        %367 = vst.msk [vmem:[%s341 + $0xd1] sm:$0x1] %vm342, 0.0
        %368 = vst.msk [vmem:[%s341 + $0xe9] sm:$0x1] %vm342, 0.0
        %369 = vst.msk [vmem:[%s341 + $0x101] sm:$0x1] %vm342, 0.0
        %370 = vst.msk [vmem:[%s341 + $0x119] sm:$0x1] %vm342, 0.0
        %371 = vst.msk [vmem:[%s341 + $0x131] sm:$0x1] %vm342, 0.0
        %372 = vst.msk [vmem:[%s341 + $0x149] sm:$0x1] %vm342, 0.0
        %373 = vst.msk [vmem:[%s341 + $0x161] sm:$0x1] %vm342, 0.0
        %374 = vst.msk [vmem:[%s341 + $0x179] sm:$0x1] %vm342, 0.0
        %375 = vst.msk [vmem:[%s341 + $0x1] sm:$0xff] %vm332, %v300
        %376 = vst.msk [vmem:[%s341 + $0x9] sm:$0xff] %vm332, %v301
        %377 = vst.msk [vmem:[%s341 + $0x19] sm:$0xff] %vm332, %v302
        %378 = vst.msk [vmem:[%s341 + $0x21] sm:$0xff] %vm332, %v303
        %379 = vst.msk [vmem:[%s341 + $0x31] sm:$0xff] %vm332, %v304
        %380 = vst.msk [vmem:[%s341 + $0x39] sm:$0xff] %vm332, %v305
        %381 = vst.msk [vmem:[%s341 + $0x49] sm:$0xff] %vm332, %v306
        %382 = vst.msk [vmem:[%s341 + $0x51] sm:$0xff] %vm332, %v307
        %383 = vst.msk [vmem:[%s341 + $0x61] sm:$0xff] %vm332, %v308
        %384 = vst.msk [vmem:[%s341 + $0x69] sm:$0xff] %vm332, %v309
        %385 = vst.msk [vmem:[%s341 + $0x79] sm:$0xff] %vm332, %v310
        %386 = vst.msk [vmem:[%s341 + $0x81] sm:$0xff] %vm332, %v311
        %387 = vst.msk [vmem:[%s341 + $0x91] sm:$0xff] %vm332, %v312
        %388 = vst.msk [vmem:[%s341 + $0x99] sm:$0xff] %vm332, %v313
        %389 = vst.msk [vmem:[%s341 + $0xa9] sm:$0xff] %vm332, %v314
        %390 = vst.msk [vmem:[%s341 + $0xb1] sm:$0xff] %vm332, %v315
        %391 = vst.msk [vmem:[%s341 + $0xc1] sm:$0xff] %vm332, %v316
        %392 = vst.msk [vmem:[%s341 + $0xc9] sm:$0xff] %vm332, %v317
        %393 = vst.msk [vmem:[%s341 + $0xd9] sm:$0xff] %vm332, %v318
        %394 = vst.msk [vmem:[%s341 + $0xe1] sm:$0xff] %vm332, %v319
        %395 = vst.msk [vmem:[%s341 + $0xf1] sm:$0xff] %vm332, %v320
        %396 = vst.msk [vmem:[%s341 + $0xf9] sm:$0xff] %vm332, %v321
        %397 = vst.msk [vmem:[%s341 + $0x109] sm:$0xff] %vm332, %v322
        %398 = vst.msk [vmem:[%s341 + $0x111] sm:$0xff] %vm332, %v323
        %399 = vst.msk [vmem:[%s341 + $0x121] sm:$0xff] %vm332, %v324
        %400 = vst.msk [vmem:[%s341 + $0x129] sm:$0xff] %vm332, %v325
        %401 = vst.msk [vmem:[%s341 + $0x139] sm:$0xff] %vm332, %v326
        %402 = vst.msk [vmem:[%s341 + $0x141] sm:$0xff] %vm332, %v327
        %403 = vst.msk [vmem:[%s341 + $0x151] sm:$0xff] %vm332, %v328
        %404 = vst.msk [vmem:[%s341 + $0x159] sm:$0xff] %vm332, %v329
        %405 = vst.msk [vmem:[%s341 + $0x169] sm:$0xff] %vm332, %v330
        %406 = vst.msk [vmem:[%s341 + $0x171] sm:$0xff] %vm332, %v331
        %v407 = vld [vmem:[#allocation2] sm:$0xff]
        %v408 = vld [vmem:[#allocation2 + $0x8] sm:$0xff]
        %v409 = vld [vmem:[#allocation2 + $0x18] sm:$0xff]
        %v410 = vld [vmem:[#allocation2 + $0x20] sm:$0xff]
        %v411 = vld [vmem:[#allocation2 + $0x30] sm:$0xff]
        %v412 = vld [vmem:[#allocation2 + $0x38] sm:$0xff]
        %v413 = vld [vmem:[#allocation2 + $0x48] sm:$0xff]
        %v414 = vld [vmem:[#allocation2 + $0x50] sm:$0xff]
        %v415 = vld [vmem:[#allocation2 + $0x60] sm:$0xff]
        %v416 = vld [vmem:[#allocation2 + $0x68] sm:$0xff]
        %v417 = vld [vmem:[#allocation2 + $0x78] sm:$0xff]
        %v418 = vld [vmem:[#allocation2 + $0x80] sm:$0xff]
        %v419 = vld [vmem:[#allocation2 + $0x90] sm:$0xff]
        %v420 = vld [vmem:[#allocation2 + $0x98] sm:$0xff]
        %v421 = vld [vmem:[#allocation2 + $0xa8] sm:$0xff]
        %v422 = vld [vmem:[#allocation2 + $0xb0] sm:$0xff]
        %v423 = vld [vmem:[#allocation2 + $0xc0] sm:$0xff]
        %v424 = vld [vmem:[#allocation2 + $0xc8] sm:$0xff]
        %v425 = vld [vmem:[#allocation2 + $0xd8] sm:$0xff]
        %v426 = vld [vmem:[#allocation2 + $0xe0] sm:$0xff]
        %v427 = vld [vmem:[#allocation2 + $0xf0] sm:$0xff]
        %v428 = vld [vmem:[#allocation2 + $0xf8] sm:$0xff]
        %v429 = vld [vmem:[#allocation2 + $0x108] sm:$0xff]
        %v430 = vld [vmem:[#allocation2 + $0x110] sm:$0xff]
        %v431 = vld [vmem:[#allocation2 + $0x120] sm:$0xff]
        %v432 = vld [vmem:[#allocation2 + $0x128] sm:$0xff]
        %v433 = vld [vmem:[#allocation2 + $0x138] sm:$0xff]
        %v434 = vld [vmem:[#allocation2 + $0x140] sm:$0xff]
        %v435 = vld [vmem:[#allocation2 + $0x150] sm:$0xff]
        %v436 = vld [vmem:[#allocation2 + $0x158] sm:$0xff]
        %v437 = vld [vmem:[#allocation2 + $0x168] sm:$0xff]
        %v438 = vld [vmem:[#allocation2 + $0x170] sm:$0xff]
        %439 = vst.msk [vmem:[#allocation3] sm:$0xff] %vm332, %v407
        %440 = vst.msk [vmem:[#allocation3 + $0x10] sm:$0xff] %vm332, %v408
        %441 = vst.msk [vmem:[#allocation3 + $0x20] sm:$0xff] %vm332, %v409
        %442 = vst.msk [vmem:[#allocation3 + $0x30] sm:$0xff] %vm332, %v410
        %443 = vst.msk [vmem:[#allocation3 + $0x40] sm:$0xff] %vm332, %v411
        %444 = vst.msk [vmem:[#allocation3 + $0x50] sm:$0xff] %vm332, %v412
        %445 = vst.msk [vmem:[#allocation3 + $0x60] sm:$0xff] %vm332, %v413
        %446 = vst.msk [vmem:[#allocation3 + $0x70] sm:$0xff] %vm332, %v414
        %447 = vst.msk [vmem:[#allocation3 + $0x80] sm:$0xff] %vm332, %v415
        %448 = vst.msk [vmem:[#allocation3 + $0x90] sm:$0xff] %vm332, %v416
        %449 = vst.msk [vmem:[#allocation3 + $0xa0] sm:$0xff] %vm332, %v417
        %450 = vst.msk [vmem:[#allocation3 + $0xb0] sm:$0xff] %vm332, %v418
        %451 = vst.msk [vmem:[#allocation3 + $0xc0] sm:$0xff] %vm332, %v419
        %452 = vst.msk [vmem:[#allocation3 + $0xd0] sm:$0xff] %vm332, %v420
        %453 = vst.msk [vmem:[#allocation3 + $0xe0] sm:$0xff] %vm332, %v421
        %454 = vst.msk [vmem:[#allocation3 + $0xf0] sm:$0xff] %vm332, %v422
        %455 = vst.msk [vmem:[#allocation3 + $0x100] sm:$0xff] %vm332, %v423
        %456 = vst.msk [vmem:[#allocation3 + $0x110] sm:$0xff] %vm332, %v424
        %457 = vst.msk [vmem:[#allocation3 + $0x120] sm:$0xff] %vm332, %v425
        %458 = vst.msk [vmem:[#allocation3 + $0x130] sm:$0xff] %vm332, %v426
        %459 = vst.msk [vmem:[#allocation3 + $0x140] sm:$0xff] %vm332, %v427
        %460 = vst.msk [vmem:[#allocation3 + $0x150] sm:$0xff] %vm332, %v428
        %461 = vst.msk [vmem:[#allocation3 + $0x160] sm:$0xff] %vm332, %v429
        %462 = vst.msk [vmem:[#allocation3 + $0x170] sm:$0xff] %vm332, %v430
        %463 = vst.msk [vmem:[#allocation3 + $0x180] sm:$0xff] %vm332, %v431
        %464 = vst.msk [vmem:[#allocation3 + $0x190] sm:$0xff] %vm332, %v432
        %465 = vst.msk [vmem:[#allocation3 + $0x1a0] sm:$0xff] %vm332, %v433
        %466 = vst.msk [vmem:[#allocation3 + $0x1b0] sm:$0xff] %vm332, %v434
        %467 = vst.msk [vmem:[#allocation3 + $0x1c0] sm:$0xff] %vm332, %v435
        %468 = vst.msk [vmem:[#allocation3 + $0x1d0] sm:$0xff] %vm332, %v436
        %469 = vst.msk [vmem:[#allocation3 + $0x1e0] sm:$0xff] %vm332, %v437
        %470 = vst.msk [vmem:[#allocation3 + $0x1f0] sm:$0xff] %vm332, %v438
        %v471 = vld [vmem:[#allocation2 + $0x1] sm:$0xff]
        %v472 = vld [vmem:[#allocation2 + $0x9] sm:$0xff]
        %v473 = vld [vmem:[#allocation2 + $0x19] sm:$0xff]
        %v474 = vld [vmem:[#allocation2 + $0x21] sm:$0xff]
        %v475 = vld [vmem:[#allocation2 + $0x31] sm:$0xff]
        %v476 = vld [vmem:[#allocation2 + $0x39] sm:$0xff]
        %v477 = vld [vmem:[#allocation2 + $0x49] sm:$0xff]
        %v478 = vld [vmem:[#allocation2 + $0x51] sm:$0xff]
        %v479 = vld [vmem:[#allocation2 + $0x61] sm:$0xff]
        %v480 = vld [vmem:[#allocation2 + $0x69] sm:$0xff]
        %v481 = vld [vmem:[#allocation2 + $0x79] sm:$0xff]
        %v482 = vld [vmem:[#allocation2 + $0x81] sm:$0xff]
        %v483 = vld [vmem:[#allocation2 + $0x91] sm:$0xff]
        %v484 = vld [vmem:[#allocation2 + $0x99] sm:$0xff]
        %v485 = vld [vmem:[#allocation2 + $0xa9] sm:$0xff]
        %v486 = vld [vmem:[#allocation2 + $0xb1] sm:$0xff]
        %v487 = vld [vmem:[#allocation2 + $0xc1] sm:$0xff]
        %v488 = vld [vmem:[#allocation2 + $0xc9] sm:$0xff]
        %v489 = vld [vmem:[#allocation2 + $0xd9] sm:$0xff]
        %v490 = vld [vmem:[#allocation2 + $0xe1] sm:$0xff]
        %v491 = vld [vmem:[#allocation2 + $0xf1] sm:$0xff]
        %v492 = vld [vmem:[#allocation2 + $0xf9] sm:$0xff]
        %v493 = vld [vmem:[#allocation2 + $0x109] sm:$0xff]
        %v494 = vld [vmem:[#allocation2 + $0x111] sm:$0xff]
        %v495 = vld [vmem:[#allocation2 + $0x121] sm:$0xff]
        %v496 = vld [vmem:[#allocation2 + $0x129] sm:$0xff]
        %v497 = vld [vmem:[#allocation2 + $0x139] sm:$0xff]
        %v498 = vld [vmem:[#allocation2 + $0x141] sm:$0xff]
        %v499 = vld [vmem:[#allocation2 + $0x151] sm:$0xff]
        %v500 = vld [vmem:[#allocation2 + $0x159] sm:$0xff]
        %v501 = vld [vmem:[#allocation2 + $0x169] sm:$0xff]
        %v502 = vld [vmem:[#allocation2 + $0x171] sm:$0xff]
        %535 = vrot.lane.b32.xlu0 %v471, 16
        %v536 = vpop.permute.xlu0 %535
        %537 = vrot.lane.b32.xlu0 %v472, 16
        %v538 = vpop.permute.xlu0 %537
        %539 = vrot.lane.b32.xlu0 %v473, 16
        %v540 = vpop.permute.xlu0 %539
        %541 = vrot.lane.b32.xlu0 %v474, 16
        %v542 = vpop.permute.xlu0 %541
        %543 = vrot.lane.b32.xlu0 %v475, 16
        %v544 = vpop.permute.xlu0 %543
        %545 = vrot.lane.b32.xlu0 %v476, 16
        %v546 = vpop.permute.xlu0 %545
        %547 = vrot.lane.b32.xlu0 %v477, 16
        %v548 = vpop.permute.xlu0 %547
        %549 = vrot.lane.b32.xlu0 %v478, 16
        %v550 = vpop.permute.xlu0 %549
        %551 = vrot.lane.b32.xlu0 %v479, 16
        %v552 = vpop.permute.xlu0 %551
        %553 = vrot.lane.b32.xlu0 %v480, 16
        %v554 = vpop.permute.xlu0 %553
        %555 = vrot.lane.b32.xlu0 %v481, 16
        %v556 = vpop.permute.xlu0 %555
        %557 = vrot.lane.b32.xlu0 %v482, 16
        %v558 = vpop.permute.xlu0 %557
        %559 = vrot.lane.b32.xlu0 %v483, 16
        %v560 = vpop.permute.xlu0 %559
        %561 = vrot.lane.b32.xlu0 %v484, 16
        %v562 = vpop.permute.xlu0 %561
        %563 = vrot.lane.b32.xlu0 %v485, 16
        %v564 = vpop.permute.xlu0 %563
        %565 = vrot.lane.b32.xlu0 %v486, 16
        %v566 = vpop.permute.xlu0 %565
        %567 = vrot.lane.b32.xlu0 %v487, 16
        %v568 = vpop.permute.xlu0 %567
        %569 = vrot.lane.b32.xlu0 %v488, 16
        %v570 = vpop.permute.xlu0 %569
        %571 = vrot.lane.b32.xlu0 %v489, 16
        %v572 = vpop.permute.xlu0 %571
        %573 = vrot.lane.b32.xlu0 %v490, 16
        %v574 = vpop.permute.xlu0 %573
        %575 = vrot.lane.b32.xlu0 %v491, 16
        %v576 = vpop.permute.xlu0 %575
        %577 = vrot.lane.b32.xlu0 %v492, 16
        %v578 = vpop.permute.xlu0 %577
        %579 = vrot.lane.b32.xlu0 %v493, 16
        %v580 = vpop.permute.xlu0 %579
        %581 = vrot.lane.b32.xlu0 %v494, 16
        %v582 = vpop.permute.xlu0 %581
        %583 = vrot.lane.b32.xlu0 %v495, 16
        %v584 = vpop.permute.xlu0 %583
        %585 = vrot.lane.b32.xlu0 %v496, 16
        %v586 = vpop.permute.xlu0 %585
        %587 = vrot.lane.b32.xlu0 %v497, 16
        %v588 = vpop.permute.xlu0 %587
        %589 = vrot.lane.b32.xlu0 %v498, 16
        %v590 = vpop.permute.xlu0 %589
        %591 = vrot.lane.b32.xlu0 %v499, 16
        %v592 = vpop.permute.xlu0 %591
        %593 = vrot.lane.b32.xlu0 %v500, 16
        %v594 = vpop.permute.xlu0 %593
        %595 = vrot.lane.b32.xlu0 %v501, 16
        %v596 = vpop.permute.xlu0 %595
        %597 = vrot.lane.b32.xlu0 %v502, 16
        %v598 = vpop.permute.xlu0 %597
        %vm631 = vcmask 261248
        %632 = vst.msk [vmem:[#allocation3] sm:$0xff] %vm631, %v536
        %633 = vst.msk [vmem:[#allocation3 + $0x10] sm:$0xff] %vm631, %v538
        %634 = vst.msk [vmem:[#allocation3 + $0x20] sm:$0xff] %vm631, %v540
        %635 = vst.msk [vmem:[#allocation3 + $0x30] sm:$0xff] %vm631, %v542
        %636 = vst.msk [vmem:[#allocation3 + $0x40] sm:$0xff] %vm631, %v544
        %637 = vst.msk [vmem:[#allocation3 + $0x50] sm:$0xff] %vm631, %v546
        %638 = vst.msk [vmem:[#allocation3 + $0x60] sm:$0xff] %vm631, %v548
        %639 = vst.msk [vmem:[#allocation3 + $0x70] sm:$0xff] %vm631, %v550
        %640 = vst.msk [vmem:[#allocation3 + $0x80] sm:$0xff] %vm631, %v552
        %641 = vst.msk [vmem:[#allocation3 + $0x90] sm:$0xff] %vm631, %v554
        %642 = vst.msk [vmem:[#allocation3 + $0xa0] sm:$0xff] %vm631, %v556
        %643 = vst.msk [vmem:[#allocation3 + $0xb0] sm:$0xff] %vm631, %v558
        %644 = vst.msk [vmem:[#allocation3 + $0xc0] sm:$0xff] %vm631, %v560
        %645 = vst.msk [vmem:[#allocation3 + $0xd0] sm:$0xff] %vm631, %v562
        %646 = vst.msk [vmem:[#allocation3 + $0xe0] sm:$0xff] %vm631, %v564
        %647 = vst.msk [vmem:[#allocation3 + $0xf0] sm:$0xff] %vm631, %v566
        %648 = vst.msk [vmem:[#allocation3 + $0x100] sm:$0xff] %vm631, %v568
        %649 = vst.msk [vmem:[#allocation3 + $0x110] sm:$0xff] %vm631, %v570
        %650 = vst.msk [vmem:[#allocation3 + $0x120] sm:$0xff] %vm631, %v572
        %651 = vst.msk [vmem:[#allocation3 + $0x130] sm:$0xff] %vm631, %v574
        %652 = vst.msk [vmem:[#allocation3 + $0x140] sm:$0xff] %vm631, %v576
        %653 = vst.msk [vmem:[#allocation3 + $0x150] sm:$0xff] %vm631, %v578
        %654 = vst.msk [vmem:[#allocation3 + $0x160] sm:$0xff] %vm631, %v580
        %655 = vst.msk [vmem:[#allocation3 + $0x170] sm:$0xff] %vm631, %v582
        %656 = vst.msk [vmem:[#allocation3 + $0x180] sm:$0xff] %vm631, %v584
        %657 = vst.msk [vmem:[#allocation3 + $0x190] sm:$0xff] %vm631, %v586
        %658 = vst.msk [vmem:[#allocation3 + $0x1a0] sm:$0xff] %vm631, %v588
        %659 = vst.msk [vmem:[#allocation3 + $0x1b0] sm:$0xff] %vm631, %v590
        %660 = vst.msk [vmem:[#allocation3 + $0x1c0] sm:$0xff] %vm631, %v592
        %661 = vst.msk [vmem:[#allocation3 + $0x1d0] sm:$0xff] %vm631, %v594
        %662 = vst.msk [vmem:[#allocation3 + $0x1e0] sm:$0xff] %vm631, %v596
        %663 = vst.msk [vmem:[#allocation3 + $0x1f0] sm:$0xff] %vm631, %v598
        %v664 = vld [vmem:[#allocation2 + $0x2] sm:$0xff]
        %v665 = vld [vmem:[#allocation2 + $0xa] sm:$0xff]
        %v666 = vld [vmem:[#allocation2 + $0x1a] sm:$0xff]
        %v667 = vld [vmem:[#allocation2 + $0x22] sm:$0xff]
        %v668 = vld [vmem:[#allocation2 + $0x32] sm:$0xff]
        %v669 = vld [vmem:[#allocation2 + $0x3a] sm:$0xff]
        %v670 = vld [vmem:[#allocation2 + $0x4a] sm:$0xff]
        %v671 = vld [vmem:[#allocation2 + $0x52] sm:$0xff]
        %v672 = vld [vmem:[#allocation2 + $0x62] sm:$0xff]
        %v673 = vld [vmem:[#allocation2 + $0x6a] sm:$0xff]
        %v674 = vld [vmem:[#allocation2 + $0x7a] sm:$0xff]
        %v675 = vld [vmem:[#allocation2 + $0x82] sm:$0xff]
        %v676 = vld [vmem:[#allocation2 + $0x92] sm:$0xff]
        %v677 = vld [vmem:[#allocation2 + $0x9a] sm:$0xff]
        %v678 = vld [vmem:[#allocation2 + $0xaa] sm:$0xff]
        %v679 = vld [vmem:[#allocation2 + $0xb2] sm:$0xff]
        %v680 = vld [vmem:[#allocation2 + $0xc2] sm:$0xff]
        %v681 = vld [vmem:[#allocation2 + $0xca] sm:$0xff]
        %v682 = vld [vmem:[#allocation2 + $0xda] sm:$0xff]
        %v683 = vld [vmem:[#allocation2 + $0xe2] sm:$0xff]
        %v684 = vld [vmem:[#allocation2 + $0xf2] sm:$0xff]
        %v685 = vld [vmem:[#allocation2 + $0xfa] sm:$0xff]
        %v686 = vld [vmem:[#allocation2 + $0x10a] sm:$0xff]
        %v687 = vld [vmem:[#allocation2 + $0x112] sm:$0xff]
        %v688 = vld [vmem:[#allocation2 + $0x122] sm:$0xff]
        %v689 = vld [vmem:[#allocation2 + $0x12a] sm:$0xff]
        %v690 = vld [vmem:[#allocation2 + $0x13a] sm:$0xff]
        %v691 = vld [vmem:[#allocation2 + $0x142] sm:$0xff]
        %v692 = vld [vmem:[#allocation2 + $0x152] sm:$0xff]
        %v693 = vld [vmem:[#allocation2 + $0x15a] sm:$0xff]
        %v694 = vld [vmem:[#allocation2 + $0x16a] sm:$0xff]
        %v695 = vld [vmem:[#allocation2 + $0x172] sm:$0xff]
        %728 = vrot.lane.b32.xlu0 %v664, 32
        %v729 = vpop.permute.xlu0 %728
        %730 = vrot.lane.b32.xlu0 %v665, 32
        %v731 = vpop.permute.xlu0 %730
        %732 = vrot.lane.b32.xlu0 %v666, 32
        %v733 = vpop.permute.xlu0 %732
        %734 = vrot.lane.b32.xlu0 %v667, 32
        %v735 = vpop.permute.xlu0 %734
        %736 = vrot.lane.b32.xlu0 %v668, 32
        %v737 = vpop.permute.xlu0 %736
        %738 = vrot.lane.b32.xlu0 %v669, 32
        %v739 = vpop.permute.xlu0 %738
        %740 = vrot.lane.b32.xlu0 %v670, 32
        %v741 = vpop.permute.xlu0 %740
        %742 = vrot.lane.b32.xlu0 %v671, 32
        %v743 = vpop.permute.xlu0 %742
        %744 = vrot.lane.b32.xlu0 %v672, 32
        %v745 = vpop.permute.xlu0 %744
        %746 = vrot.lane.b32.xlu0 %v673, 32
        %v747 = vpop.permute.xlu0 %746
        %748 = vrot.lane.b32.xlu0 %v674, 32
        %v749 = vpop.permute.xlu0 %748
        %750 = vrot.lane.b32.xlu0 %v675, 32
        %v751 = vpop.permute.xlu0 %750
        %752 = vrot.lane.b32.xlu0 %v676, 32
        %v753 = vpop.permute.xlu0 %752
        %754 = vrot.lane.b32.xlu0 %v677, 32
        %v755 = vpop.permute.xlu0 %754
        %756 = vrot.lane.b32.xlu0 %v678, 32
        %v757 = vpop.permute.xlu0 %756
        %758 = vrot.lane.b32.xlu0 %v679, 32
        %v759 = vpop.permute.xlu0 %758
        %760 = vrot.lane.b32.xlu0 %v680, 32
        %v761 = vpop.permute.xlu0 %760
        %762 = vrot.lane.b32.xlu0 %v681, 32
        %v763 = vpop.permute.xlu0 %762
        %764 = vrot.lane.b32.xlu0 %v682, 32
        %v765 = vpop.permute.xlu0 %764
        %766 = vrot.lane.b32.xlu0 %v683, 32
        %v767 = vpop.permute.xlu0 %766
        %768 = vrot.lane.b32.xlu0 %v684, 32
        %v769 = vpop.permute.xlu0 %768
        %770 = vrot.lane.b32.xlu0 %v685, 32
        %v771 = vpop.permute.xlu0 %770
        %772 = vrot.lane.b32.xlu0 %v686, 32
        %v773 = vpop.permute.xlu0 %772
        %774 = vrot.lane.b32.xlu0 %v687, 32
        %v775 = vpop.permute.xlu0 %774
        %776 = vrot.lane.b32.xlu0 %v688, 32
        %v777 = vpop.permute.xlu0 %776
        %778 = vrot.lane.b32.xlu0 %v689, 32
        %v779 = vpop.permute.xlu0 %778
        %780 = vrot.lane.b32.xlu0 %v690, 32
        %v781 = vpop.permute.xlu0 %780
        %782 = vrot.lane.b32.xlu0 %v691, 32
        %v783 = vpop.permute.xlu0 %782
        %784 = vrot.lane.b32.xlu0 %v692, 32
        %v785 = vpop.permute.xlu0 %784
        %786 = vrot.lane.b32.xlu0 %v693, 32
        %v787 = vpop.permute.xlu0 %786
        %788 = vrot.lane.b32.xlu0 %v694, 32
        %v789 = vpop.permute.xlu0 %788
        %790 = vrot.lane.b32.xlu0 %v695, 32
        %v791 = vpop.permute.xlu0 %790
        %vm824 = vcmask 392448
        %825 = vst.msk [vmem:[#allocation3] sm:$0xff] %vm824, %v729
        %826 = vst.msk [vmem:[#allocation3 + $0x10] sm:$0xff] %vm824, %v731
        %827 = vst.msk [vmem:[#allocation3 + $0x20] sm:$0xff] %vm824, %v733
        %828 = vst.msk [vmem:[#allocation3 + $0x30] sm:$0xff] %vm824, %v735
        %829 = vst.msk [vmem:[#allocation3 + $0x40] sm:$0xff] %vm824, %v737
        %830 = vst.msk [vmem:[#allocation3 + $0x50] sm:$0xff] %vm824, %v739
        %831 = vst.msk [vmem:[#allocation3 + $0x60] sm:$0xff] %vm824, %v741
        %832 = vst.msk [vmem:[#allocation3 + $0x70] sm:$0xff] %vm824, %v743
        %833 = vst.msk [vmem:[#allocation3 + $0x80] sm:$0xff] %vm824, %v745
        %834 = vst.msk [vmem:[#allocation3 + $0x90] sm:$0xff] %vm824, %v747
        %835 = vst.msk [vmem:[#allocation3 + $0xa0] sm:$0xff] %vm824, %v749
        %836 = vst.msk [vmem:[#allocation3 + $0xb0] sm:$0xff] %vm824, %v751
        %837 = vst.msk [vmem:[#allocation3 + $0xc0] sm:$0xff] %vm824, %v753
        %838 = vst.msk [vmem:[#allocation3 + $0xd0] sm:$0xff] %vm824, %v755
        %839 = vst.msk [vmem:[#allocation3 + $0xe0] sm:$0xff] %vm824, %v757
        %840 = vst.msk [vmem:[#allocation3 + $0xf0] sm:$0xff] %vm824, %v759
        %841 = vst.msk [vmem:[#allocation3 + $0x100] sm:$0xff] %vm824, %v761
        %842 = vst.msk [vmem:[#allocation3 + $0x110] sm:$0xff] %vm824, %v763
        %843 = vst.msk [vmem:[#allocation3 + $0x120] sm:$0xff] %vm824, %v765
        %844 = vst.msk [vmem:[#allocation3 + $0x130] sm:$0xff] %vm824, %v767
        %845 = vst.msk [vmem:[#allocation3 + $0x140] sm:$0xff] %vm824, %v769
        %846 = vst.msk [vmem:[#allocation3 + $0x150] sm:$0xff] %vm824, %v771
        %847 = vst.msk [vmem:[#allocation3 + $0x160] sm:$0xff] %vm824, %v773
        %848 = vst.msk [vmem:[#allocation3 + $0x170] sm:$0xff] %vm824, %v775
        %849 = vst.msk [vmem:[#allocation3 + $0x180] sm:$0xff] %vm824, %v777
        %850 = vst.msk [vmem:[#allocation3 + $0x190] sm:$0xff] %vm824, %v779
        %851 = vst.msk [vmem:[#allocation3 + $0x1a0] sm:$0xff] %vm824, %v781
        %852 = vst.msk [vmem:[#allocation3 + $0x1b0] sm:$0xff] %vm824, %v783
        %853 = vst.msk [vmem:[#allocation3 + $0x1c0] sm:$0xff] %vm824, %v785
        %854 = vst.msk [vmem:[#allocation3 + $0x1d0] sm:$0xff] %vm824, %v787
        %855 = vst.msk [vmem:[#allocation3 + $0x1e0] sm:$0xff] %vm824, %v789
        %856 = vst.msk [vmem:[#allocation3 + $0x1f0] sm:$0xff] %vm824, %v791
        %v857 = vld [vmem:[%s341] sm:$0xff]
        %v858 = vld [vmem:[%s341 + $0x8] sm:$0xff]
        %v859 = vld [vmem:[%s341 + $0x18] sm:$0xff]
        %v860 = vld [vmem:[%s341 + $0x20] sm:$0xff]
        %v861 = vld [vmem:[%s341 + $0x30] sm:$0xff]
        %v862 = vld [vmem:[%s341 + $0x38] sm:$0xff]
        %v863 = vld [vmem:[%s341 + $0x48] sm:$0xff]
        %v864 = vld [vmem:[%s341 + $0x50] sm:$0xff]
        %v865 = vld [vmem:[%s341 + $0x60] sm:$0xff]
        %v866 = vld [vmem:[%s341 + $0x68] sm:$0xff]
        %v867 = vld [vmem:[%s341 + $0x78] sm:$0xff]
        %v868 = vld [vmem:[%s341 + $0x80] sm:$0xff]
        %v869 = vld [vmem:[%s341 + $0x90] sm:$0xff]
        %v870 = vld [vmem:[%s341 + $0x98] sm:$0xff]
        %v871 = vld [vmem:[%s341 + $0xa8] sm:$0xff]
        %v872 = vld [vmem:[%s341 + $0xb0] sm:$0xff]
        %v873 = vld [vmem:[%s341 + $0xc0] sm:$0xff]
        %v874 = vld [vmem:[%s341 + $0xc8] sm:$0xff]
        %v875 = vld [vmem:[%s341 + $0xd8] sm:$0xff]
        %v876 = vld [vmem:[%s341 + $0xe0] sm:$0xff]
        %v877 = vld [vmem:[%s341 + $0xf0] sm:$0xff]
        %v878 = vld [vmem:[%s341 + $0xf8] sm:$0xff]
        %v879 = vld [vmem:[%s341 + $0x108] sm:$0xff]
        %v880 = vld [vmem:[%s341 + $0x110] sm:$0xff]
        %v881 = vld [vmem:[%s341 + $0x120] sm:$0xff]
        %v882 = vld [vmem:[%s341 + $0x128] sm:$0xff]
        %v883 = vld [vmem:[%s341 + $0x138] sm:$0xff]
        %v884 = vld [vmem:[%s341 + $0x140] sm:$0xff]
        %v885 = vld [vmem:[%s341 + $0x150] sm:$0xff]
        %v886 = vld [vmem:[%s341 + $0x158] sm:$0xff]
        %v887 = vld [vmem:[%s341 + $0x168] sm:$0xff]
        %v888 = vld [vmem:[%s341 + $0x170] sm:$0xff]
        %921 = vrot.lane.b32.xlu0 %v857, 48
        %v922 = vpop.permute.xlu0 %921
        %923 = vrot.lane.b32.xlu0 %v858, 48
        %v924 = vpop.permute.xlu0 %923
        %925 = vrot.lane.b32.xlu0 %v859, 48
        %v926 = vpop.permute.xlu0 %925
        %927 = vrot.lane.b32.xlu0 %v860, 48
        %v928 = vpop.permute.xlu0 %927
        %929 = vrot.lane.b32.xlu0 %v861, 48
        %v930 = vpop.permute.xlu0 %929
        %931 = vrot.lane.b32.xlu0 %v862, 48
        %v932 = vpop.permute.xlu0 %931
        %933 = vrot.lane.b32.xlu0 %v863, 48
        %v934 = vpop.permute.xlu0 %933
        %935 = vrot.lane.b32.xlu0 %v864, 48
        %v936 = vpop.permute.xlu0 %935
        %937 = vrot.lane.b32.xlu0 %v865, 48
        %v938 = vpop.permute.xlu0 %937
        %939 = vrot.lane.b32.xlu0 %v866, 48
        %v940 = vpop.permute.xlu0 %939
        %941 = vrot.lane.b32.xlu0 %v867, 48
        %v942 = vpop.permute.xlu0 %941
        %943 = vrot.lane.b32.xlu0 %v868, 48
        %v944 = vpop.permute.xlu0 %943
        %945 = vrot.lane.b32.xlu0 %v869, 48
        %v946 = vpop.permute.xlu0 %945
        %947 = vrot.lane.b32.xlu0 %v870, 48
        %v948 = vpop.permute.xlu0 %947
        %949 = vrot.lane.b32.xlu0 %v871, 48
        %v950 = vpop.permute.xlu0 %949
        %951 = vrot.lane.b32.xlu0 %v872, 48
        %v952 = vpop.permute.xlu0 %951
        %953 = vrot.lane.b32.xlu0 %v873, 48
        %v954 = vpop.permute.xlu0 %953
        %955 = vrot.lane.b32.xlu0 %v874, 48
        %v956 = vpop.permute.xlu0 %955
        %957 = vrot.lane.b32.xlu0 %v875, 48
        %v958 = vpop.permute.xlu0 %957
        %959 = vrot.lane.b32.xlu0 %v876, 48
        %v960 = vpop.permute.xlu0 %959
        %961 = vrot.lane.b32.xlu0 %v877, 48
        %v962 = vpop.permute.xlu0 %961
        %963 = vrot.lane.b32.xlu0 %v878, 48
        %v964 = vpop.permute.xlu0 %963
        %965 = vrot.lane.b32.xlu0 %v879, 48
        %v966 = vpop.permute.xlu0 %965
        %967 = vrot.lane.b32.xlu0 %v880, 48
        %v968 = vpop.permute.xlu0 %967
        %969 = vrot.lane.b32.xlu0 %v881, 48
        %v970 = vpop.permute.xlu0 %969
        %971 = vrot.lane.b32.xlu0 %v882, 48
        %v972 = vpop.permute.xlu0 %971
        %973 = vrot.lane.b32.xlu0 %v883, 48
        %v974 = vpop.permute.xlu0 %973
        %975 = vrot.lane.b32.xlu0 %v884, 48
        %v976 = vpop.permute.xlu0 %975
        %977 = vrot.lane.b32.xlu0 %v885, 48
        %v978 = vpop.permute.xlu0 %977
        %979 = vrot.lane.b32.xlu0 %v886, 48
        %v980 = vpop.permute.xlu0 %979
        %981 = vrot.lane.b32.xlu0 %v887, 48
        %v982 = vpop.permute.xlu0 %981
        %983 = vrot.lane.b32.xlu0 %v888, 48
        %v984 = vpop.permute.xlu0 %983
        %vm1017 = vcmask 523648
        %1018 = vst.msk [vmem:[#allocation3] sm:$0xff] %vm1017, %v922
        %1019 = vst.msk [vmem:[#allocation3 + $0x10] sm:$0xff] %vm1017, %v924
        %1020 = vst.msk [vmem:[#allocation3 + $0x20] sm:$0xff] %vm1017, %v926
        %1021 = vst.msk [vmem:[#allocation3 + $0x30] sm:$0xff] %vm1017, %v928
        %1022 = vst.msk [vmem:[#allocation3 + $0x40] sm:$0xff] %vm1017, %v930
        %1023 = vst.msk [vmem:[#allocation3 + $0x50] sm:$0xff] %vm1017, %v932
        %1024 = vst.msk [vmem:[#allocation3 + $0x60] sm:$0xff] %vm1017, %v934
        %1025 = vst.msk [vmem:[#allocation3 + $0x70] sm:$0xff] %vm1017, %v936
        %1026 = vst.msk [vmem:[#allocation3 + $0x80] sm:$0xff] %vm1017, %v938
        %1027 = vst.msk [vmem:[#allocation3 + $0x90] sm:$0xff] %vm1017, %v940
        %1028 = vst.msk [vmem:[#allocation3 + $0xa0] sm:$0xff] %vm1017, %v942
        %1029 = vst.msk [vmem:[#allocation3 + $0xb0] sm:$0xff] %vm1017, %v944
        %1030 = vst.msk [vmem:[#allocation3 + $0xc0] sm:$0xff] %vm1017, %v946
        %1031 = vst.msk [vmem:[#allocation3 + $0xd0] sm:$0xff] %vm1017, %v948
        %1032 = vst.msk [vmem:[#allocation3 + $0xe0] sm:$0xff] %vm1017, %v950
        %1033 = vst.msk [vmem:[#allocation3 + $0xf0] sm:$0xff] %vm1017, %v952
        %1034 = vst.msk [vmem:[#allocation3 + $0x100] sm:$0xff] %vm1017, %v954
        %1035 = vst.msk [vmem:[#allocation3 + $0x110] sm:$0xff] %vm1017, %v956
        %1036 = vst.msk [vmem:[#allocation3 + $0x120] sm:$0xff] %vm1017, %v958
        %1037 = vst.msk [vmem:[#allocation3 + $0x130] sm:$0xff] %vm1017, %v960
        %1038 = vst.msk [vmem:[#allocation3 + $0x140] sm:$0xff] %vm1017, %v962
        %1039 = vst.msk [vmem:[#allocation3 + $0x150] sm:$0xff] %vm1017, %v964
        %1040 = vst.msk [vmem:[#allocation3 + $0x160] sm:$0xff] %vm1017, %v966
        %1041 = vst.msk [vmem:[#allocation3 + $0x170] sm:$0xff] %vm1017, %v968
        %1042 = vst.msk [vmem:[#allocation3 + $0x180] sm:$0xff] %vm1017, %v970
        %1043 = vst.msk [vmem:[#allocation3 + $0x190] sm:$0xff] %vm1017, %v972
        %1044 = vst.msk [vmem:[#allocation3 + $0x1a0] sm:$0xff] %vm1017, %v974
        %1045 = vst.msk [vmem:[#allocation3 + $0x1b0] sm:$0xff] %vm1017, %v976
        %1046 = vst.msk [vmem:[#allocation3 + $0x1c0] sm:$0xff] %vm1017, %v978
        %1047 = vst.msk [vmem:[#allocation3 + $0x1d0] sm:$0xff] %vm1017, %v980
        %1048 = vst.msk [vmem:[#allocation3 + $0x1e0] sm:$0xff] %vm1017, %v982
        %1049 = vst.msk [vmem:[#allocation3 + $0x1f0] sm:$0xff] %vm1017, %v984
        %v1050 = vld [vmem:[%s341 + $0x1] sm:$0xff]
        %v1051 = vld [vmem:[%s341 + $0x9] sm:$0xff]
        %v1052 = vld [vmem:[%s341 + $0x19] sm:$0xff]
        %v1053 = vld [vmem:[%s341 + $0x21] sm:$0xff]
        %v1054 = vld [vmem:[%s341 + $0x31] sm:$0xff]
        %v1055 = vld [vmem:[%s341 + $0x39] sm:$0xff]
        %v1056 = vld [vmem:[%s341 + $0x49] sm:$0xff]
        %v1057 = vld [vmem:[%s341 + $0x51] sm:$0xff]
        %v1058 = vld [vmem:[%s341 + $0x61] sm:$0xff]
        %v1059 = vld [vmem:[%s341 + $0x69] sm:$0xff]
        %v1060 = vld [vmem:[%s341 + $0x79] sm:$0xff]
        %v1061 = vld [vmem:[%s341 + $0x81] sm:$0xff]
        %v1062 = vld [vmem:[%s341 + $0x91] sm:$0xff]
        %v1063 = vld [vmem:[%s341 + $0x99] sm:$0xff]
        %v1064 = vld [vmem:[%s341 + $0xa9] sm:$0xff]
        %v1065 = vld [vmem:[%s341 + $0xb1] sm:$0xff]
        %v1066 = vld [vmem:[%s341 + $0xc1] sm:$0xff]
        %v1067 = vld [vmem:[%s341 + $0xc9] sm:$0xff]
        %v1068 = vld [vmem:[%s341 + $0xd9] sm:$0xff]
        %v1069 = vld [vmem:[%s341 + $0xe1] sm:$0xff]
        %v1070 = vld [vmem:[%s341 + $0xf1] sm:$0xff]
        %v1071 = vld [vmem:[%s341 + $0xf9] sm:$0xff]
        %v1072 = vld [vmem:[%s341 + $0x109] sm:$0xff]
        %v1073 = vld [vmem:[%s341 + $0x111] sm:$0xff]
        %v1074 = vld [vmem:[%s341 + $0x121] sm:$0xff]
        %v1075 = vld [vmem:[%s341 + $0x129] sm:$0xff]
        %v1076 = vld [vmem:[%s341 + $0x139] sm:$0xff]
        %v1077 = vld [vmem:[%s341 + $0x141] sm:$0xff]
        %v1078 = vld [vmem:[%s341 + $0x151] sm:$0xff]
        %v1079 = vld [vmem:[%s341 + $0x159] sm:$0xff]
        %v1080 = vld [vmem:[%s341 + $0x169] sm:$0xff]
        %v1081 = vld [vmem:[%s341 + $0x171] sm:$0xff]
        %1114 = vrot.lane.b32.xlu0 %v1050, 64
        %v1115 = vpop.permute.xlu0 %1114
        %1116 = vrot.lane.b32.xlu0 %v1051, 64
        %v1117 = vpop.permute.xlu0 %1116
        %1118 = vrot.lane.b32.xlu0 %v1052, 64
        %v1119 = vpop.permute.xlu0 %1118
        %1120 = vrot.lane.b32.xlu0 %v1053, 64
        %v1121 = vpop.permute.xlu0 %1120
        %1122 = vrot.lane.b32.xlu0 %v1054, 64
        %v1123 = vpop.permute.xlu0 %1122
        %1124 = vrot.lane.b32.xlu0 %v1055, 64
        %v1125 = vpop.permute.xlu0 %1124
        %1126 = vrot.lane.b32.xlu0 %v1056, 64
        %v1127 = vpop.permute.xlu0 %1126
        %1128 = vrot.lane.b32.xlu0 %v1057, 64
        %v1129 = vpop.permute.xlu0 %1128
        %1130 = vrot.lane.b32.xlu0 %v1058, 64
        %v1131 = vpop.permute.xlu0 %1130
        %1132 = vrot.lane.b32.xlu0 %v1059, 64
        %v1133 = vpop.permute.xlu0 %1132
        %1134 = vrot.lane.b32.xlu0 %v1060, 64
        %v1135 = vpop.permute.xlu0 %1134
        %1136 = vrot.lane.b32.xlu0 %v1061, 64
        %v1137 = vpop.permute.xlu0 %1136
        %1138 = vrot.lane.b32.xlu0 %v1062, 64
        %v1139 = vpop.permute.xlu0 %1138
        %1140 = vrot.lane.b32.xlu0 %v1063, 64
        %v1141 = vpop.permute.xlu0 %1140
        %1142 = vrot.lane.b32.xlu0 %v1064, 64
        %v1143 = vpop.permute.xlu0 %1142
        %1144 = vrot.lane.b32.xlu0 %v1065, 64
        %v1145 = vpop.permute.xlu0 %1144
        %1146 = vrot.lane.b32.xlu0 %v1066, 64
        %v1147 = vpop.permute.xlu0 %1146
        %1148 = vrot.lane.b32.xlu0 %v1067, 64
        %v1149 = vpop.permute.xlu0 %1148
        %1150 = vrot.lane.b32.xlu0 %v1068, 64
        %v1151 = vpop.permute.xlu0 %1150
        %1152 = vrot.lane.b32.xlu0 %v1069, 64
        %v1153 = vpop.permute.xlu0 %1152
        %1154 = vrot.lane.b32.xlu0 %v1070, 64
        %v1155 = vpop.permute.xlu0 %1154
        %1156 = vrot.lane.b32.xlu0 %v1071, 64
        %v1157 = vpop.permute.xlu0 %1156
        %1158 = vrot.lane.b32.xlu0 %v1072, 64
        %v1159 = vpop.permute.xlu0 %1158
        %1160 = vrot.lane.b32.xlu0 %v1073, 64
        %v1161 = vpop.permute.xlu0 %1160
        %1162 = vrot.lane.b32.xlu0 %v1074, 64
        %v1163 = vpop.permute.xlu0 %1162
        %1164 = vrot.lane.b32.xlu0 %v1075, 64
        %v1165 = vpop.permute.xlu0 %1164
        %1166 = vrot.lane.b32.xlu0 %v1076, 64
        %v1167 = vpop.permute.xlu0 %1166
        %1168 = vrot.lane.b32.xlu0 %v1077, 64
        %v1169 = vpop.permute.xlu0 %1168
        %1170 = vrot.lane.b32.xlu0 %v1078, 64
        %v1171 = vpop.permute.xlu0 %1170
        %1172 = vrot.lane.b32.xlu0 %v1079, 64
        %v1173 = vpop.permute.xlu0 %1172
        %1174 = vrot.lane.b32.xlu0 %v1080, 64
        %v1175 = vpop.permute.xlu0 %1174
        %1176 = vrot.lane.b32.xlu0 %v1081, 64
        %v1177 = vpop.permute.xlu0 %1176
        %vm1210 = vcmask 654848
        %1211 = vst.msk [vmem:[#allocation3] sm:$0xff] %vm1210, %v1115
        %1212 = vst.msk [vmem:[#allocation3 + $0x10] sm:$0xff] %vm1210, %v1117
        %1213 = vst.msk [vmem:[#allocation3 + $0x20] sm:$0xff] %vm1210, %v1119
        %1214 = vst.msk [vmem:[#allocation3 + $0x30] sm:$0xff] %vm1210, %v1121
        %1215 = vst.msk [vmem:[#allocation3 + $0x40] sm:$0xff] %vm1210, %v1123
        %1216 = vst.msk [vmem:[#allocation3 + $0x50] sm:$0xff] %vm1210, %v1125
        %1217 = vst.msk [vmem:[#allocation3 + $0x60] sm:$0xff] %vm1210, %v1127
        %1218 = vst.msk [vmem:[#allocation3 + $0x70] sm:$0xff] %vm1210, %v1129
        %1219 = vst.msk [vmem:[#allocation3 + $0x80] sm:$0xff] %vm1210, %v1131
        %1220 = vst.msk [vmem:[#allocation3 + $0x90] sm:$0xff] %vm1210, %v1133
        %1221 = vst.msk [vmem:[#allocation3 + $0xa0] sm:$0xff] %vm1210, %v1135
        %1222 = vst.msk [vmem:[#allocation3 + $0xb0] sm:$0xff] %vm1210, %v1137
        %1223 = vst.msk [vmem:[#allocation3 + $0xc0] sm:$0xff] %vm1210, %v1139
        %1224 = vst.msk [vmem:[#allocation3 + $0xd0] sm:$0xff] %vm1210, %v1141
        %1225 = vst.msk [vmem:[#allocation3 + $0xe0] sm:$0xff] %vm1210, %v1143
        %1226 = vst.msk [vmem:[#allocation3 + $0xf0] sm:$0xff] %vm1210, %v1145
        %1227 = vst.msk [vmem:[#allocation3 + $0x100] sm:$0xff] %vm1210, %v1147
        %1228 = vst.msk [vmem:[#allocation3 + $0x110] sm:$0xff] %vm1210, %v1149
        %1229 = vst.msk [vmem:[#allocation3 + $0x120] sm:$0xff] %vm1210, %v1151
        %1230 = vst.msk [vmem:[#allocation3 + $0x130] sm:$0xff] %vm1210, %v1153
        %1231 = vst.msk [vmem:[#allocation3 + $0x140] sm:$0xff] %vm1210, %v1155
        %1232 = vst.msk [vmem:[#allocation3 + $0x150] sm:$0xff] %vm1210, %v1157
        %1233 = vst.msk [vmem:[#allocation3 + $0x160] sm:$0xff] %vm1210, %v1159
        %1234 = vst.msk [vmem:[#allocation3 + $0x170] sm:$0xff] %vm1210, %v1161
        %1235 = vst.msk [vmem:[#allocation3 + $0x180] sm:$0xff] %vm1210, %v1163
        %1236 = vst.msk [vmem:[#allocation3 + $0x190] sm:$0xff] %vm1210, %v1165
        %1237 = vst.msk [vmem:[#allocation3 + $0x1a0] sm:$0xff] %vm1210, %v1167
        %1238 = vst.msk [vmem:[#allocation3 + $0x1b0] sm:$0xff] %vm1210, %v1169
        %1239 = vst.msk [vmem:[#allocation3 + $0x1c0] sm:$0xff] %vm1210, %v1171
        %1240 = vst.msk [vmem:[#allocation3 + $0x1d0] sm:$0xff] %vm1210, %v1173
        %1241 = vst.msk [vmem:[#allocation3 + $0x1e0] sm:$0xff] %vm1210, %v1175
        %1242 = vst.msk [vmem:[#allocation3 + $0x1f0] sm:$0xff] %vm1210, %v1177
        %v1243 = vld [vmem:[%s341 + $0x2] sm:$0xff]
        %v1244 = vld [vmem:[%s341 + $0xa] sm:$0xff]
        %v1245 = vld [vmem:[%s341 + $0x1a] sm:$0xff]
        %v1246 = vld [vmem:[%s341 + $0x22] sm:$0xff]
        %v1247 = vld [vmem:[%s341 + $0x32] sm:$0xff]
        %v1248 = vld [vmem:[%s341 + $0x3a] sm:$0xff]
        %v1249 = vld [vmem:[%s341 + $0x4a] sm:$0xff]
        %v1250 = vld [vmem:[%s341 + $0x52] sm:$0xff]
        %v1251 = vld [vmem:[%s341 + $0x62] sm:$0xff]
        %v1252 = vld [vmem:[%s341 + $0x6a] sm:$0xff]
        %v1253 = vld [vmem:[%s341 + $0x7a] sm:$0xff]
        %v1254 = vld [vmem:[%s341 + $0x82] sm:$0xff]
        %v1255 = vld [vmem:[%s341 + $0x92] sm:$0xff]
        %v1256 = vld [vmem:[%s341 + $0x9a] sm:$0xff]
        %v1257 = vld [vmem:[%s341 + $0xaa] sm:$0xff]
        %v1258 = vld [vmem:[%s341 + $0xb2] sm:$0xff]
        %v1259 = vld [vmem:[%s341 + $0xc2] sm:$0xff]
        %v1260 = vld [vmem:[%s341 + $0xca] sm:$0xff]
        %v1261 = vld [vmem:[%s341 + $0xda] sm:$0xff]
        %v1262 = vld [vmem:[%s341 + $0xe2] sm:$0xff]
        %v1263 = vld [vmem:[%s341 + $0xf2] sm:$0xff]
        %v1264 = vld [vmem:[%s341 + $0xfa] sm:$0xff]
        %v1265 = vld [vmem:[%s341 + $0x10a] sm:$0xff]
        %v1266 = vld [vmem:[%s341 + $0x112] sm:$0xff]
        %v1267 = vld [vmem:[%s341 + $0x122] sm:$0xff]
        %v1268 = vld [vmem:[%s341 + $0x12a] sm:$0xff]
        %v1269 = vld [vmem:[%s341 + $0x13a] sm:$0xff]
        %v1270 = vld [vmem:[%s341 + $0x142] sm:$0xff]
        %v1271 = vld [vmem:[%s341 + $0x152] sm:$0xff]
        %v1272 = vld [vmem:[%s341 + $0x15a] sm:$0xff]
        %v1273 = vld [vmem:[%s341 + $0x16a] sm:$0xff]
        %v1274 = vld [vmem:[%s341 + $0x172] sm:$0xff]
        %1307 = vrot.lane.b32.xlu0 %v1243, 80
        %v1308 = vpop.permute.xlu0 %1307
        %1309 = vrot.lane.b32.xlu0 %v1244, 80
        %v1310 = vpop.permute.xlu0 %1309
        %1311 = vrot.lane.b32.xlu0 %v1245, 80
        %v1312 = vpop.permute.xlu0 %1311
        %1313 = vrot.lane.b32.xlu0 %v1246, 80
        %v1314 = vpop.permute.xlu0 %1313
        %1315 = vrot.lane.b32.xlu0 %v1247, 80
        %v1316 = vpop.permute.xlu0 %1315
        %1317 = vrot.lane.b32.xlu0 %v1248, 80
        %v1318 = vpop.permute.xlu0 %1317
        %1319 = vrot.lane.b32.xlu0 %v1249, 80
        %v1320 = vpop.permute.xlu0 %1319
        %1321 = vrot.lane.b32.xlu0 %v1250, 80
        %v1322 = vpop.permute.xlu0 %1321
        %1323 = vrot.lane.b32.xlu0 %v1251, 80
        %v1324 = vpop.permute.xlu0 %1323
        %1325 = vrot.lane.b32.xlu0 %v1252, 80
        %v1326 = vpop.permute.xlu0 %1325
        %1327 = vrot.lane.b32.xlu0 %v1253, 80
        %v1328 = vpop.permute.xlu0 %1327
        %1329 = vrot.lane.b32.xlu0 %v1254, 80
        %v1330 = vpop.permute.xlu0 %1329
        %1331 = vrot.lane.b32.xlu0 %v1255, 80
        %v1332 = vpop.permute.xlu0 %1331
        %1333 = vrot.lane.b32.xlu0 %v1256, 80
        %v1334 = vpop.permute.xlu0 %1333
        %1335 = vrot.lane.b32.xlu0 %v1257, 80
        %v1336 = vpop.permute.xlu0 %1335
        %1337 = vrot.lane.b32.xlu0 %v1258, 80
        %v1338 = vpop.permute.xlu0 %1337
        %1339 = vrot.lane.b32.xlu0 %v1259, 80
        %v1340 = vpop.permute.xlu0 %1339
        %1341 = vrot.lane.b32.xlu0 %v1260, 80
        %v1342 = vpop.permute.xlu0 %1341
        %1343 = vrot.lane.b32.xlu0 %v1261, 80
        %v1344 = vpop.permute.xlu0 %1343
        %1345 = vrot.lane.b32.xlu0 %v1262, 80
        %v1346 = vpop.permute.xlu0 %1345
        %1347 = vrot.lane.b32.xlu0 %v1263, 80
        %v1348 = vpop.permute.xlu0 %1347
        %1349 = vrot.lane.b32.xlu0 %v1264, 80
        %v1350 = vpop.permute.xlu0 %1349
        %1351 = vrot.lane.b32.xlu0 %v1265, 80
        %v1352 = vpop.permute.xlu0 %1351
        %1353 = vrot.lane.b32.xlu0 %v1266, 80
        %v1354 = vpop.permute.xlu0 %1353
        %1355 = vrot.lane.b32.xlu0 %v1267, 80
        %v1356 = vpop.permute.xlu0 %1355
        %1357 = vrot.lane.b32.xlu0 %v1268, 80
        %v1358 = vpop.permute.xlu0 %1357
        %1359 = vrot.lane.b32.xlu0 %v1269, 80
        %v1360 = vpop.permute.xlu0 %1359
        %1361 = vrot.lane.b32.xlu0 %v1270, 80
        %v1362 = vpop.permute.xlu0 %1361
        %1363 = vrot.lane.b32.xlu0 %v1271, 80
        %v1364 = vpop.permute.xlu0 %1363
        %1365 = vrot.lane.b32.xlu0 %v1272, 80
        %v1366 = vpop.permute.xlu0 %1365
        %1367 = vrot.lane.b32.xlu0 %v1273, 80
        %v1368 = vpop.permute.xlu0 %1367
        %1369 = vrot.lane.b32.xlu0 %v1274, 80
        %v1370 = vpop.permute.xlu0 %1369
        %vm1403 = vcmask 786048
        %1404 = vst.msk [vmem:[#allocation3] sm:$0xff] %vm1403, %v1308
        %1405 = vst.msk [vmem:[#allocation3 + $0x10] sm:$0xff] %vm1403, %v1310
        %1406 = vst.msk [vmem:[#allocation3 + $0x20] sm:$0xff] %vm1403, %v1312
        %1407 = vst.msk [vmem:[#allocation3 + $0x30] sm:$0xff] %vm1403, %v1314
        %1408 = vst.msk [vmem:[#allocation3 + $0x40] sm:$0xff] %vm1403, %v1316
        %1409 = vst.msk [vmem:[#allocation3 + $0x50] sm:$0xff] %vm1403, %v1318
        %1410 = vst.msk [vmem:[#allocation3 + $0x60] sm:$0xff] %vm1403, %v1320
        %1411 = vst.msk [vmem:[#allocation3 + $0x70] sm:$0xff] %vm1403, %v1322
        %1412 = vst.msk [vmem:[#allocation3 + $0x80] sm:$0xff] %vm1403, %v1324
        %1413 = vst.msk [vmem:[#allocation3 + $0x90] sm:$0xff] %vm1403, %v1326
        %1414 = vst.msk [vmem:[#allocation3 + $0xa0] sm:$0xff] %vm1403, %v1328
        %1415 = vst.msk [vmem:[#allocation3 + $0xb0] sm:$0xff] %vm1403, %v1330
        %1416 = vst.msk [vmem:[#allocation3 + $0xc0] sm:$0xff] %vm1403, %v1332
        %1417 = vst.msk [vmem:[#allocation3 + $0xd0] sm:$0xff] %vm1403, %v1334
        %1418 = vst.msk [vmem:[#allocation3 + $0xe0] sm:$0xff] %vm1403, %v1336
        %1419 = vst.msk [vmem:[#allocation3 + $0xf0] sm:$0xff] %vm1403, %v1338
        %1420 = vst.msk [vmem:[#allocation3 + $0x100] sm:$0xff] %vm1403, %v1340
        %1421 = vst.msk [vmem:[#allocation3 + $0x110] sm:$0xff] %vm1403, %v1342
        %1422 = vst.msk [vmem:[#allocation3 + $0x120] sm:$0xff] %vm1403, %v1344
        %1423 = vst.msk [vmem:[#allocation3 + $0x130] sm:$0xff] %vm1403, %v1346
        %1424 = vst.msk [vmem:[#allocation3 + $0x140] sm:$0xff] %vm1403, %v1348
        %1425 = vst.msk [vmem:[#allocation3 + $0x150] sm:$0xff] %vm1403, %v1350
        %1426 = vst.msk [vmem:[#allocation3 + $0x160] sm:$0xff] %vm1403, %v1352
        %1427 = vst.msk [vmem:[#allocation3 + $0x170] sm:$0xff] %vm1403, %v1354
        %1428 = vst.msk [vmem:[#allocation3 + $0x180] sm:$0xff] %vm1403, %v1356
        %1429 = vst.msk [vmem:[#allocation3 + $0x190] sm:$0xff] %vm1403, %v1358
        %1430 = vst.msk [vmem:[#allocation3 + $0x1a0] sm:$0xff] %vm1403, %v1360
        %1431 = vst.msk [vmem:[#allocation3 + $0x1b0] sm:$0xff] %vm1403, %v1362
        %1432 = vst.msk [vmem:[#allocation3 + $0x1c0] sm:$0xff] %vm1403, %v1364
        %1433 = vst.msk [vmem:[#allocation3 + $0x1d0] sm:$0xff] %vm1403, %v1366
        %1434 = vst.msk [vmem:[#allocation3 + $0x1e0] sm:$0xff] %vm1403, %v1368
        %1435 = vst.msk [vmem:[#allocation3 + $0x1f0] sm:$0xff] %vm1403, %v1370
        %s1436 = scalar_lea.vmem [#allocation2], 48
        %v1437 = vld [vmem:[%s1436] sm:$0xff]
        %v1438 = vld [vmem:[%s1436 + $0x8] sm:$0xff]
        %v1439 = vld [vmem:[%s1436 + $0x18] sm:$0xff]
        %v1440 = vld [vmem:[%s1436 + $0x20] sm:$0xff]
        %v1441 = vld [vmem:[%s1436 + $0x30] sm:$0xff]
        %v1442 = vld [vmem:[%s1436 + $0x38] sm:$0xff]
        %v1443 = vld [vmem:[%s1436 + $0x48] sm:$0xff]
        %v1444 = vld [vmem:[%s1436 + $0x50] sm:$0xff]
        %v1445 = vld [vmem:[%s1436 + $0x60] sm:$0xff]
        %v1446 = vld [vmem:[%s1436 + $0x68] sm:$0xff]
        %v1447 = vld [vmem:[%s1436 + $0x78] sm:$0xff]
        %v1448 = vld [vmem:[%s1436 + $0x80] sm:$0xff]
        %v1449 = vld [vmem:[%s1436 + $0x90] sm:$0xff]
        %v1450 = vld [vmem:[%s1436 + $0x98] sm:$0xff]
        %v1451 = vld [vmem:[%s1436 + $0xa8] sm:$0xff]
        %v1452 = vld [vmem:[%s1436 + $0xb0] sm:$0xff]
        %v1453 = vld [vmem:[%s1436 + $0xc0] sm:$0xff]
        %v1454 = vld [vmem:[%s1436 + $0xc8] sm:$0xff]
        %v1455 = vld [vmem:[%s1436 + $0xd8] sm:$0xff]
        %v1456 = vld [vmem:[%s1436 + $0xe0] sm:$0xff]
        %v1457 = vld [vmem:[%s1436 + $0xf0] sm:$0xff]
        %v1458 = vld [vmem:[%s1436 + $0xf8] sm:$0xff]
        %v1459 = vld [vmem:[%s1436 + $0x108] sm:$0xff]
        %v1460 = vld [vmem:[%s1436 + $0x110] sm:$0xff]
        %v1461 = vld [vmem:[%s1436 + $0x120] sm:$0xff]
        %v1462 = vld [vmem:[%s1436 + $0x128] sm:$0xff]
        %v1463 = vld [vmem:[%s1436 + $0x138] sm:$0xff]
        %v1464 = vld [vmem:[%s1436 + $0x140] sm:$0xff]
        %v1465 = vld [vmem:[%s1436 + $0x150] sm:$0xff]
        %v1466 = vld [vmem:[%s1436 + $0x158] sm:$0xff]
        %v1467 = vld [vmem:[%s1436 + $0x168] sm:$0xff]
        %v1468 = vld [vmem:[%s1436 + $0x170] sm:$0xff]
        %1501 = vrot.lane.b32.xlu0 %v1437, 96
        %v1502 = vpop.permute.xlu0 %1501
        %1503 = vrot.lane.b32.xlu0 %v1438, 96
        %v1504 = vpop.permute.xlu0 %1503
        %1505 = vrot.lane.b32.xlu0 %v1439, 96
        %v1506 = vpop.permute.xlu0 %1505
        %1507 = vrot.lane.b32.xlu0 %v1440, 96
        %v1508 = vpop.permute.xlu0 %1507
        %1509 = vrot.lane.b32.xlu0 %v1441, 96
        %v1510 = vpop.permute.xlu0 %1509
        %1511 = vrot.lane.b32.xlu0 %v1442, 96
        %v1512 = vpop.permute.xlu0 %1511
        %1513 = vrot.lane.b32.xlu0 %v1443, 96
        %v1514 = vpop.permute.xlu0 %1513
        %1515 = vrot.lane.b32.xlu0 %v1444, 96
        %v1516 = vpop.permute.xlu0 %1515
        %1517 = vrot.lane.b32.xlu0 %v1445, 96
        %v1518 = vpop.permute.xlu0 %1517
        %1519 = vrot.lane.b32.xlu0 %v1446, 96
        %v1520 = vpop.permute.xlu0 %1519
        %1521 = vrot.lane.b32.xlu0 %v1447, 96
        %v1522 = vpop.permute.xlu0 %1521
        %1523 = vrot.lane.b32.xlu0 %v1448, 96
        %v1524 = vpop.permute.xlu0 %1523
        %1525 = vrot.lane.b32.xlu0 %v1449, 96
        %v1526 = vpop.permute.xlu0 %1525
        %1527 = vrot.lane.b32.xlu0 %v1450, 96
        %v1528 = vpop.permute.xlu0 %1527
        %1529 = vrot.lane.b32.xlu0 %v1451, 96
        %v1530 = vpop.permute.xlu0 %1529
        %1531 = vrot.lane.b32.xlu0 %v1452, 96
        %v1532 = vpop.permute.xlu0 %1531
        %1533 = vrot.lane.b32.xlu0 %v1453, 96
        %v1534 = vpop.permute.xlu0 %1533
        %1535 = vrot.lane.b32.xlu0 %v1454, 96
        %v1536 = vpop.permute.xlu0 %1535
        %1537 = vrot.lane.b32.xlu0 %v1455, 96
        %v1538 = vpop.permute.xlu0 %1537
        %1539 = vrot.lane.b32.xlu0 %v1456, 96
        %v1540 = vpop.permute.xlu0 %1539
        %1541 = vrot.lane.b32.xlu0 %v1457, 96
        %v1542 = vpop.permute.xlu0 %1541
        %1543 = vrot.lane.b32.xlu0 %v1458, 96
        %v1544 = vpop.permute.xlu0 %1543
        %1545 = vrot.lane.b32.xlu0 %v1459, 96
        %v1546 = vpop.permute.xlu0 %1545
        %1547 = vrot.lane.b32.xlu0 %v1460, 96
        %v1548 = vpop.permute.xlu0 %1547
        %1549 = vrot.lane.b32.xlu0 %v1461, 96
        %v1550 = vpop.permute.xlu0 %1549
        %1551 = vrot.lane.b32.xlu0 %v1462, 96
        %v1552 = vpop.permute.xlu0 %1551
        %1553 = vrot.lane.b32.xlu0 %v1463, 96
        %v1554 = vpop.permute.xlu0 %1553
        %1555 = vrot.lane.b32.xlu0 %v1464, 96
        %v1556 = vpop.permute.xlu0 %1555
        %1557 = vrot.lane.b32.xlu0 %v1465, 96
        %v1558 = vpop.permute.xlu0 %1557
        %1559 = vrot.lane.b32.xlu0 %v1466, 96
        %v1560 = vpop.permute.xlu0 %1559
        %1561 = vrot.lane.b32.xlu0 %v1467, 96
        %v1562 = vpop.permute.xlu0 %1561
        %1563 = vrot.lane.b32.xlu0 %v1468, 96
        %v1564 = vpop.permute.xlu0 %1563
        %vm1597 = vcmask 917248
        %1598 = vst.msk [vmem:[#allocation3] sm:$0xff] %vm1597, %v1502
        %1599 = vst.msk [vmem:[#allocation3 + $0x10] sm:$0xff] %vm1597, %v1504
        %1600 = vst.msk [vmem:[#allocation3 + $0x20] sm:$0xff] %vm1597, %v1506
        %1601 = vst.msk [vmem:[#allocation3 + $0x30] sm:$0xff] %vm1597, %v1508
        %1602 = vst.msk [vmem:[#allocation3 + $0x40] sm:$0xff] %vm1597, %v1510
        %1603 = vst.msk [vmem:[#allocation3 + $0x50] sm:$0xff] %vm1597, %v1512
        %1604 = vst.msk [vmem:[#allocation3 + $0x60] sm:$0xff] %vm1597, %v1514
        %1605 = vst.msk [vmem:[#allocation3 + $0x70] sm:$0xff] %vm1597, %v1516
        %1606 = vst.msk [vmem:[#allocation3 + $0x80] sm:$0xff] %vm1597, %v1518
        %1607 = vst.msk [vmem:[#allocation3 + $0x90] sm:$0xff] %vm1597, %v1520
        %1608 = vst.msk [vmem:[#allocation3 + $0xa0] sm:$0xff] %vm1597, %v1522
        %1609 = vst.msk [vmem:[#allocation3 + $0xb0] sm:$0xff] %vm1597, %v1524
        %1610 = vst.msk [vmem:[#allocation3 + $0xc0] sm:$0xff] %vm1597, %v1526
        %1611 = vst.msk [vmem:[#allocation3 + $0xd0] sm:$0xff] %vm1597, %v1528
        %1612 = vst.msk [vmem:[#allocation3 + $0xe0] sm:$0xff] %vm1597, %v1530
        %1613 = vst.msk [vmem:[#allocation3 + $0xf0] sm:$0xff] %vm1597, %v1532
        %1614 = vst.msk [vmem:[#allocation3 + $0x100] sm:$0xff] %vm1597, %v1534
        %1615 = vst.msk [vmem:[#allocation3 + $0x110] sm:$0xff] %vm1597, %v1536
        %1616 = vst.msk [vmem:[#allocation3 + $0x120] sm:$0xff] %vm1597, %v1538
        %1617 = vst.msk [vmem:[#allocation3 + $0x130] sm:$0xff] %vm1597, %v1540
        %1618 = vst.msk [vmem:[#allocation3 + $0x140] sm:$0xff] %vm1597, %v1542
        %1619 = vst.msk [vmem:[#allocation3 + $0x150] sm:$0xff] %vm1597, %v1544
        %1620 = vst.msk [vmem:[#allocation3 + $0x160] sm:$0xff] %vm1597, %v1546
        %1621 = vst.msk [vmem:[#allocation3 + $0x170] sm:$0xff] %vm1597, %v1548
        %1622 = vst.msk [vmem:[#allocation3 + $0x180] sm:$0xff] %vm1597, %v1550
        %1623 = vst.msk [vmem:[#allocation3 + $0x190] sm:$0xff] %vm1597, %v1552
        %1624 = vst.msk [vmem:[#allocation3 + $0x1a0] sm:$0xff] %vm1597, %v1554
        %1625 = vst.msk [vmem:[#allocation3 + $0x1b0] sm:$0xff] %vm1597, %v1556
        %1626 = vst.msk [vmem:[#allocation3 + $0x1c0] sm:$0xff] %vm1597, %v1558
        %1627 = vst.msk [vmem:[#allocation3 + $0x1d0] sm:$0xff] %vm1597, %v1560
        %1628 = vst.msk [vmem:[#allocation3 + $0x1e0] sm:$0xff] %vm1597, %v1562
        %1629 = vst.msk [vmem:[#allocation3 + $0x1f0] sm:$0xff] %vm1597, %v1564
        %v1630 = vld [vmem:[%s1436 + $0x1] sm:$0xff]
        %v1631 = vld [vmem:[%s1436 + $0x9] sm:$0xff]
        %v1632 = vld [vmem:[%s1436 + $0x19] sm:$0xff]
        %v1633 = vld [vmem:[%s1436 + $0x21] sm:$0xff]
        %v1634 = vld [vmem:[%s1436 + $0x31] sm:$0xff]
        %v1635 = vld [vmem:[%s1436 + $0x39] sm:$0xff]
        %v1636 = vld [vmem:[%s1436 + $0x49] sm:$0xff]
        %v1637 = vld [vmem:[%s1436 + $0x51] sm:$0xff]
        %v1638 = vld [vmem:[%s1436 + $0x61] sm:$0xff]
        %v1639 = vld [vmem:[%s1436 + $0x69] sm:$0xff]
        %v1640 = vld [vmem:[%s1436 + $0x79] sm:$0xff]
        %v1641 = vld [vmem:[%s1436 + $0x81] sm:$0xff]
        %v1642 = vld [vmem:[%s1436 + $0x91] sm:$0xff]
        %v1643 = vld [vmem:[%s1436 + $0x99] sm:$0xff]
        %v1644 = vld [vmem:[%s1436 + $0xa9] sm:$0xff]
        %v1645 = vld [vmem:[%s1436 + $0xb1] sm:$0xff]
        %v1646 = vld [vmem:[%s1436 + $0xc1] sm:$0xff]
        %v1647 = vld [vmem:[%s1436 + $0xc9] sm:$0xff]
        %v1648 = vld [vmem:[%s1436 + $0xd9] sm:$0xff]
        %v1649 = vld [vmem:[%s1436 + $0xe1] sm:$0xff]
        %v1650 = vld [vmem:[%s1436 + $0xf1] sm:$0xff]
        %v1651 = vld [vmem:[%s1436 + $0xf9] sm:$0xff]
        %v1652 = vld [vmem:[%s1436 + $0x109] sm:$0xff]
        %v1653 = vld [vmem:[%s1436 + $0x111] sm:$0xff]
        %v1654 = vld [vmem:[%s1436 + $0x121] sm:$0xff]
        %v1655 = vld [vmem:[%s1436 + $0x129] sm:$0xff]
        %v1656 = vld [vmem:[%s1436 + $0x139] sm:$0xff]
        %v1657 = vld [vmem:[%s1436 + $0x141] sm:$0xff]
        %v1658 = vld [vmem:[%s1436 + $0x151] sm:$0xff]
        %v1659 = vld [vmem:[%s1436 + $0x159] sm:$0xff]
        %v1660 = vld [vmem:[%s1436 + $0x169] sm:$0xff]
        %v1661 = vld [vmem:[%s1436 + $0x171] sm:$0xff]
        %1694 = vrot.lane.b32.xlu0 %v1630, 112
        %v1695 = vpop.permute.xlu0 %1694
        %1696 = vrot.lane.b32.xlu0 %v1631, 112
        %v1697 = vpop.permute.xlu0 %1696
        %1698 = vrot.lane.b32.xlu0 %v1632, 112
        %v1699 = vpop.permute.xlu0 %1698
        %1700 = vrot.lane.b32.xlu0 %v1633, 112
        %v1701 = vpop.permute.xlu0 %1700
        %1702 = vrot.lane.b32.xlu0 %v1634, 112
        %v1703 = vpop.permute.xlu0 %1702
        %1704 = vrot.lane.b32.xlu0 %v1635, 112
        %v1705 = vpop.permute.xlu0 %1704
        %1706 = vrot.lane.b32.xlu0 %v1636, 112
        %v1707 = vpop.permute.xlu0 %1706
        %1708 = vrot.lane.b32.xlu0 %v1637, 112
        %v1709 = vpop.permute.xlu0 %1708
        %1710 = vrot.lane.b32.xlu0 %v1638, 112
        %v1711 = vpop.permute.xlu0 %1710
        %1712 = vrot.lane.b32.xlu0 %v1639, 112
        %v1713 = vpop.permute.xlu0 %1712
        %1714 = vrot.lane.b32.xlu0 %v1640, 112
        %v1715 = vpop.permute.xlu0 %1714
        %1716 = vrot.lane.b32.xlu0 %v1641, 112
        %v1717 = vpop.permute.xlu0 %1716
        %1718 = vrot.lane.b32.xlu0 %v1642, 112
        %v1719 = vpop.permute.xlu0 %1718
        %1720 = vrot.lane.b32.xlu0 %v1643, 112
        %v1721 = vpop.permute.xlu0 %1720
        %1722 = vrot.lane.b32.xlu0 %v1644, 112
        %v1723 = vpop.permute.xlu0 %1722
        %1724 = vrot.lane.b32.xlu0 %v1645, 112
        %v1725 = vpop.permute.xlu0 %1724
        %1726 = vrot.lane.b32.xlu0 %v1646, 112
        %v1727 = vpop.permute.xlu0 %1726
        %1728 = vrot.lane.b32.xlu0 %v1647, 112
        %v1729 = vpop.permute.xlu0 %1728
        %1730 = vrot.lane.b32.xlu0 %v1648, 112
        %v1731 = vpop.permute.xlu0 %1730
        %1732 = vrot.lane.b32.xlu0 %v1649, 112
        %v1733 = vpop.permute.xlu0 %1732
        %1734 = vrot.lane.b32.xlu0 %v1650, 112
        %v1735 = vpop.permute.xlu0 %1734
        %1736 = vrot.lane.b32.xlu0 %v1651, 112
        %v1737 = vpop.permute.xlu0 %1736
        %1738 = vrot.lane.b32.xlu0 %v1652, 112
        %v1739 = vpop.permute.xlu0 %1738
        %1740 = vrot.lane.b32.xlu0 %v1653, 112
        %v1741 = vpop.permute.xlu0 %1740
        %1742 = vrot.lane.b32.xlu0 %v1654, 112
        %v1743 = vpop.permute.xlu0 %1742
        %1744 = vrot.lane.b32.xlu0 %v1655, 112
        %v1745 = vpop.permute.xlu0 %1744
        %1746 = vrot.lane.b32.xlu0 %v1656, 112
        %v1747 = vpop.permute.xlu0 %1746
        %1748 = vrot.lane.b32.xlu0 %v1657, 112
        %v1749 = vpop.permute.xlu0 %1748
        %1750 = vrot.lane.b32.xlu0 %v1658, 112
        %v1751 = vpop.permute.xlu0 %1750
        %1752 = vrot.lane.b32.xlu0 %v1659, 112
        %v1753 = vpop.permute.xlu0 %1752
        %1754 = vrot.lane.b32.xlu0 %v1660, 112
        %v1755 = vpop.permute.xlu0 %1754
        %1756 = vrot.lane.b32.xlu0 %v1661, 112
        %v1757 = vpop.permute.xlu0 %1756
        %vm1790 = vcmask 1048448
        %1791 = vst.msk [vmem:[#allocation3] sm:$0xff] %vm1790, %v1695
        %1792 = vst.msk [vmem:[#allocation3 + $0x10] sm:$0xff] %vm1790, %v1697
        %1793 = vst.msk [vmem:[#allocation3 + $0x20] sm:$0xff] %vm1790, %v1699
        %1794 = vst.msk [vmem:[#allocation3 + $0x30] sm:$0xff] %vm1790, %v1701
        %1795 = vst.msk [vmem:[#allocation3 + $0x40] sm:$0xff] %vm1790, %v1703
        %1796 = vst.msk [vmem:[#allocation3 + $0x50] sm:$0xff] %vm1790, %v1705
        %1797 = vst.msk [vmem:[#allocation3 + $0x60] sm:$0xff] %vm1790, %v1707
        %1798 = vst.msk [vmem:[#allocation3 + $0x70] sm:$0xff] %vm1790, %v1709
        %1799 = vst.msk [vmem:[#allocation3 + $0x80] sm:$0xff] %vm1790, %v1711
        %1800 = vst.msk [vmem:[#allocation3 + $0x90] sm:$0xff] %vm1790, %v1713
        %1801 = vst.msk [vmem:[#allocation3 + $0xa0] sm:$0xff] %vm1790, %v1715
        %1802 = vst.msk [vmem:[#allocation3 + $0xb0] sm:$0xff] %vm1790, %v1717
        %1803 = vst.msk [vmem:[#allocation3 + $0xc0] sm:$0xff] %vm1790, %v1719
        %1804 = vst.msk [vmem:[#allocation3 + $0xd0] sm:$0xff] %vm1790, %v1721
        %1805 = vst.msk [vmem:[#allocation3 + $0xe0] sm:$0xff] %vm1790, %v1723
        %1806 = vst.msk [vmem:[#allocation3 + $0xf0] sm:$0xff] %vm1790, %v1725
        %1807 = vst.msk [vmem:[#allocation3 + $0x100] sm:$0xff] %vm1790, %v1727
        %1808 = vst.msk [vmem:[#allocation3 + $0x110] sm:$0xff] %vm1790, %v1729
        %1809 = vst.msk [vmem:[#allocation3 + $0x120] sm:$0xff] %vm1790, %v1731
        %1810 = vst.msk [vmem:[#allocation3 + $0x130] sm:$0xff] %vm1790, %v1733
        %1811 = vst.msk [vmem:[#allocation3 + $0x140] sm:$0xff] %vm1790, %v1735
        %1812 = vst.msk [vmem:[#allocation3 + $0x150] sm:$0xff] %vm1790, %v1737
        %1813 = vst.msk [vmem:[#allocation3 + $0x160] sm:$0xff] %vm1790, %v1739
        %1814 = vst.msk [vmem:[#allocation3 + $0x170] sm:$0xff] %vm1790, %v1741
        %1815 = vst.msk [vmem:[#allocation3 + $0x180] sm:$0xff] %vm1790, %v1743
        %1816 = vst.msk [vmem:[#allocation3 + $0x190] sm:$0xff] %vm1790, %v1745
        %1817 = vst.msk [vmem:[#allocation3 + $0x1a0] sm:$0xff] %vm1790, %v1747
        %1818 = vst.msk [vmem:[#allocation3 + $0x1b0] sm:$0xff] %vm1790, %v1749
        %1819 = vst.msk [vmem:[#allocation3 + $0x1c0] sm:$0xff] %vm1790, %v1751
        %1820 = vst.msk [vmem:[#allocation3 + $0x1d0] sm:$0xff] %vm1790, %v1753
        %1821 = vst.msk [vmem:[#allocation3 + $0x1e0] sm:$0xff] %vm1790, %v1755
        %1822 = vst.msk [vmem:[#allocation3 + $0x1f0] sm:$0xff] %vm1790, %v1757
        %v1823 = vld [vmem:[%s1436 + $0x2] sm:$0xff]
        %v1824 = vld [vmem:[%s1436 + $0xa] sm:$0xff]
        %v1825 = vld [vmem:[%s1436 + $0x1a] sm:$0xff]
        %v1826 = vld [vmem:[%s1436 + $0x22] sm:$0xff]
        %v1827 = vld [vmem:[%s1436 + $0x32] sm:$0xff]
        %v1828 = vld [vmem:[%s1436 + $0x3a] sm:$0xff]
        %v1829 = vld [vmem:[%s1436 + $0x4a] sm:$0xff]
        %v1830 = vld [vmem:[%s1436 + $0x52] sm:$0xff]
        %v1831 = vld [vmem:[%s1436 + $0x62] sm:$0xff]
        %v1832 = vld [vmem:[%s1436 + $0x6a] sm:$0xff]
        %v1833 = vld [vmem:[%s1436 + $0x7a] sm:$0xff]
        %v1834 = vld [vmem:[%s1436 + $0x82] sm:$0xff]
        %v1835 = vld [vmem:[%s1436 + $0x92] sm:$0xff]
        %v1836 = vld [vmem:[%s1436 + $0x9a] sm:$0xff]
        %v1837 = vld [vmem:[%s1436 + $0xaa] sm:$0xff]
        %v1838 = vld [vmem:[%s1436 + $0xb2] sm:$0xff]
        %v1839 = vld [vmem:[%s1436 + $0xc2] sm:$0xff]
        %v1840 = vld [vmem:[%s1436 + $0xca] sm:$0xff]
        %v1841 = vld [vmem:[%s1436 + $0xda] sm:$0xff]
        %v1842 = vld [vmem:[%s1436 + $0xe2] sm:$0xff]
        %v1843 = vld [vmem:[%s1436 + $0xf2] sm:$0xff]
        %v1844 = vld [vmem:[%s1436 + $0xfa] sm:$0xff]
        %v1845 = vld [vmem:[%s1436 + $0x10a] sm:$0xff]
        %v1846 = vld [vmem:[%s1436 + $0x112] sm:$0xff]
        %v1847 = vld [vmem:[%s1436 + $0x122] sm:$0xff]
        %v1848 = vld [vmem:[%s1436 + $0x12a] sm:$0xff]
        %v1849 = vld [vmem:[%s1436 + $0x13a] sm:$0xff]
        %v1850 = vld [vmem:[%s1436 + $0x142] sm:$0xff]
        %v1851 = vld [vmem:[%s1436 + $0x152] sm:$0xff]
        %v1852 = vld [vmem:[%s1436 + $0x15a] sm:$0xff]
        %v1853 = vld [vmem:[%s1436 + $0x16a] sm:$0xff]
        %v1854 = vld [vmem:[%s1436 + $0x172] sm:$0xff]
        %1855 = vst.msk [vmem:[#allocation3 + $0x8] sm:$0xff] %vm332, %v1823
        %1856 = vst.msk [vmem:[#allocation3 + $0x18] sm:$0xff] %vm332, %v1824
        %1857 = vst.msk [vmem:[#allocation3 + $0x28] sm:$0xff] %vm332, %v1825
        %1858 = vst.msk [vmem:[#allocation3 + $0x38] sm:$0xff] %vm332, %v1826
        %1859 = vst.msk [vmem:[#allocation3 + $0x48] sm:$0xff] %vm332, %v1827
        %1860 = vst.msk [vmem:[#allocation3 + $0x58] sm:$0xff] %vm332, %v1828
        %1861 = vst.msk [vmem:[#allocation3 + $0x68] sm:$0xff] %vm332, %v1829
        %1862 = vst.msk [vmem:[#allocation3 + $0x78] sm:$0xff] %vm332, %v1830
        %1863 = vst.msk [vmem:[#allocation3 + $0x88] sm:$0xff] %vm332, %v1831
        %1864 = vst.msk [vmem:[#allocation3 + $0x98] sm:$0xff] %vm332, %v1832
        %1865 = vst.msk [vmem:[#allocation3 + $0xa8] sm:$0xff] %vm332, %v1833
        %1866 = vst.msk [vmem:[#allocation3 + $0xb8] sm:$0xff] %vm332, %v1834
        %1867 = vst.msk [vmem:[#allocation3 + $0xc8] sm:$0xff] %vm332, %v1835
        %1868 = vst.msk [vmem:[#allocation3 + $0xd8] sm:$0xff] %vm332, %v1836
        %1869 = vst.msk [vmem:[#allocation3 + $0xe8] sm:$0xff] %vm332, %v1837
        %1870 = vst.msk [vmem:[#allocation3 + $0xf8] sm:$0xff] %vm332, %v1838
        %1871 = vst.msk [vmem:[#allocation3 + $0x108] sm:$0xff] %vm332, %v1839
        %1872 = vst.msk [vmem:[#allocation3 + $0x118] sm:$0xff] %vm332, %v1840
        %1873 = vst.msk [vmem:[#allocation3 + $0x128] sm:$0xff] %vm332, %v1841
        %1874 = vst.msk [vmem:[#allocation3 + $0x138] sm:$0xff] %vm332, %v1842
        %1875 = vst.msk [vmem:[#allocation3 + $0x148] sm:$0xff] %vm332, %v1843
        %1876 = vst.msk [vmem:[#allocation3 + $0x158] sm:$0xff] %vm332, %v1844
        %1877 = vst.msk [vmem:[#allocation3 + $0x168] sm:$0xff] %vm332, %v1845
        %1878 = vst.msk [vmem:[#allocation3 + $0x178] sm:$0xff] %vm332, %v1846
        %1879 = vst.msk [vmem:[#allocation3 + $0x188] sm:$0xff] %vm332, %v1847
        %1880 = vst.msk [vmem:[#allocation3 + $0x198] sm:$0xff] %vm332, %v1848
        %1881 = vst.msk [vmem:[#allocation3 + $0x1a8] sm:$0xff] %vm332, %v1849
        %1882 = vst.msk [vmem:[#allocation3 + $0x1b8] sm:$0xff] %vm332, %v1850
        %1883 = vst.msk [vmem:[#allocation3 + $0x1c8] sm:$0xff] %vm332, %v1851
        %1884 = vst.msk [vmem:[#allocation3 + $0x1d8] sm:$0xff] %vm332, %v1852
        %1885 = vst.msk [vmem:[#allocation3 + $0x1e8] sm:$0xff] %vm332, %v1853
        %1886 = vst.msk [vmem:[#allocation3 + $0x1f8] sm:$0xff] %vm332, %v1854
        %v1887 = vld [vmem:[#allocation3] sm:$0xff]
        %v1888 = vld [vmem:[#allocation3 + $0x8] sm:$0xff]
        %v1889 = vld [vmem:[#allocation3 + $0x10] sm:$0xff]
        %v1890 = vld [vmem:[#allocation3 + $0x18] sm:$0xff]
        %v1891 = vld [vmem:[#allocation3 + $0x20] sm:$0xff]
        %v1892 = vld [vmem:[#allocation3 + $0x28] sm:$0xff]
        %v1893 = vld [vmem:[#allocation3 + $0x30] sm:$0xff]
        %v1894 = vld [vmem:[#allocation3 + $0x38] sm:$0xff]
        %v1895 = vld [vmem:[#allocation3 + $0x40] sm:$0xff]
        %v1896 = vld [vmem:[#allocation3 + $0x48] sm:$0xff]
        %v1897 = vld [vmem:[#allocation3 + $0x50] sm:$0xff]
        %v1898 = vld [vmem:[#allocation3 + $0x58] sm:$0xff]
        %v1899 = vld [vmem:[#allocation3 + $0x60] sm:$0xff]
        %v1900 = vld [vmem:[#allocation3 + $0x68] sm:$0xff]
        %v1901 = vld [vmem:[#allocation3 + $0x70] sm:$0xff]
        %v1902 = vld [vmem:[#allocation3 + $0x78] sm:$0xff]
        %v1903 = vld [vmem:[#allocation3 + $0x80] sm:$0xff]
        %v1904 = vld [vmem:[#allocation3 + $0x88] sm:$0xff]
        %v1905 = vld [vmem:[#allocation3 + $0x90] sm:$0xff]
        %v1906 = vld [vmem:[#allocation3 + $0x98] sm:$0xff]
        %v1907 = vld [vmem:[#allocation3 + $0xa0] sm:$0xff]
        %v1908 = vld [vmem:[#allocation3 + $0xa8] sm:$0xff]
        %v1909 = vld [vmem:[#allocation3 + $0xb0] sm:$0xff]
        %v1910 = vld [vmem:[#allocation3 + $0xb8] sm:$0xff]
        %v1911 = vld [vmem:[#allocation3 + $0xc0] sm:$0xff]
        %v1912 = vld [vmem:[#allocation3 + $0xc8] sm:$0xff]
        %v1913 = vld [vmem:[#allocation3 + $0xd0] sm:$0xff]
        %v1914 = vld [vmem:[#allocation3 + $0xd8] sm:$0xff]
        %v1915 = vld [vmem:[#allocation3 + $0xe0] sm:$0xff]
        %v1916 = vld [vmem:[#allocation3 + $0xe8] sm:$0xff]
        %v1917 = vld [vmem:[#allocation3 + $0xf0] sm:$0xff]
        %v1918 = vld [vmem:[#allocation3 + $0xf8] sm:$0xff]
        %v1919 = vld [vmem:[#allocation3 + $0x100] sm:$0xff]
        %v1920 = vld [vmem:[#allocation3 + $0x108] sm:$0xff]
        %v1921 = vld [vmem:[#allocation3 + $0x110] sm:$0xff]
        %v1922 = vld [vmem:[#allocation3 + $0x118] sm:$0xff]
        %v1923 = vld [vmem:[#allocation3 + $0x120] sm:$0xff]
        %v1924 = vld [vmem:[#allocation3 + $0x128] sm:$0xff]
        %v1925 = vld [vmem:[#allocation3 + $0x130] sm:$0xff]
        %v1926 = vld [vmem:[#allocation3 + $0x138] sm:$0xff]
        %v1927 = vld [vmem:[#allocation3 + $0x140] sm:$0xff]
        %v1928 = vld [vmem:[#allocation3 + $0x148] sm:$0xff]
        %v1929 = vld [vmem:[#allocation3 + $0x150] sm:$0xff]
        %v1930 = vld [vmem:[#allocation3 + $0x158] sm:$0xff]
        %v1931 = vld [vmem:[#allocation3 + $0x160] sm:$0xff]
        %v1932 = vld [vmem:[#allocation3 + $0x168] sm:$0xff]
        %v1933 = vld [vmem:[#allocation3 + $0x170] sm:$0xff]
        %v1934 = vld [vmem:[#allocation3 + $0x178] sm:$0xff]
        %v1935 = vld [vmem:[#allocation3 + $0x180] sm:$0xff]
        %v1936 = vld [vmem:[#allocation3 + $0x188] sm:$0xff]
        %v1937 = vld [vmem:[#allocation3 + $0x190] sm:$0xff]
        %v1938 = vld [vmem:[#allocation3 + $0x198] sm:$0xff]
        %v1939 = vld [vmem:[#allocation3 + $0x1a0] sm:$0xff]
        %v1940 = vld [vmem:[#allocation3 + $0x1a8] sm:$0xff]
        %v1941 = vld [vmem:[#allocation3 + $0x1b0] sm:$0xff]
        %v1942 = vld [vmem:[#allocation3 + $0x1b8] sm:$0xff]
        %v1943 = vld [vmem:[#allocation3 + $0x1c0] sm:$0xff]
        %v1944 = vld [vmem:[#allocation3 + $0x1c8] sm:$0xff]
        %v1945 = vld [vmem:[#allocation3 + $0x1d0] sm:$0xff]
        %v1946 = vld [vmem:[#allocation3 + $0x1d8] sm:$0xff]
        %v1947 = vld [vmem:[#allocation3 + $0x1e0] sm:$0xff]
        %v1948 = vld [vmem:[#allocation3 + $0x1e8] sm:$0xff]
        %v1949 = vld [vmem:[#allocation3 + $0x1f0] sm:$0xff]
        %v1950 = vld [vmem:[#allocation3 + $0x1f8] sm:$0xff]
        %v1951 = vld [vmem:[%s3] sm:$0xff]
        %v1952 = vld [vmem:[%s3 + $0x8] sm:$0xff]
        %v1953 = vld [vmem:[%s3 + $0x10] sm:$0xff]
        %v1954 = vld [vmem:[%s3 + $0x18] sm:$0xff]
        %v1955 = vld [vmem:[%s3 + $0x20] sm:$0xff]
        %v1956 = vld [vmem:[%s3 + $0x28] sm:$0xff]
        %v1957 = vld [vmem:[%s3 + $0x30] sm:$0xff]
        %v1958 = vld [vmem:[%s3 + $0x38] sm:$0xff]
        %v1959 = vld [vmem:[%s3 + $0x40] sm:$0xff]
        %v1960 = vld [vmem:[%s3 + $0x48] sm:$0xff]
        %v1961 = vld [vmem:[%s3 + $0x50] sm:$0xff]
        %v1962 = vld [vmem:[%s3 + $0x58] sm:$0xff]
        %v1963 = vld [vmem:[%s3 + $0x60] sm:$0xff]
        %v1964 = vld [vmem:[%s3 + $0x68] sm:$0xff]
        %v1965 = vld [vmem:[%s3 + $0x70] sm:$0xff]
        %v1966 = vld [vmem:[%s3 + $0x78] sm:$0xff]
        %v1967 = vld [vmem:[%s3 + $0x80] sm:$0xff]
        %v1968 = vld [vmem:[%s3 + $0x88] sm:$0xff]
        %v1970 = vsel %vm332, %v1888, 0
        %v1973 = vsel %vm332, %v1890, 0
        %v1976 = vsel %vm332, %v1892, 0
        %v1979 = vsel %vm332, %v1894, 0
        %v1982 = vsel %vm332, %v1896, 0
        %v1985 = vsel %vm332, %v1898, 0
        %v1988 = vsel %vm332, %v1900, 0
        %v1991 = vsel %vm332, %v1902, 0
        %v1994 = vsel %vm332, %v1904, 0
        %v1997 = vsel %vm332, %v1906, 0
        %v2000 = vsel %vm332, %v1908, 0
        %v2003 = vsel %vm332, %v1910, 0
        %v2006 = vsel %vm332, %v1912, 0
        %v2009 = vsel %vm332, %v1914, 0
        %v2012 = vsel %vm332, %v1916, 0
        %v2015 = vsel %vm332, %v1918, 0
        %v2018 = vsel %vm332, %v1920, 0
        %v2021 = vsel %vm332, %v1922, 0
        %v2024 = vsel %vm332, %v1924, 0
        %v2027 = vsel %vm332, %v1926, 0
        %v2030 = vsel %vm332, %v1928, 0
        %v2033 = vsel %vm332, %v1930, 0
        %v2036 = vsel %vm332, %v1932, 0
        %v2039 = vsel %vm332, %v1934, 0
        %v2042 = vsel %vm332, %v1936, 0
        %v2045 = vsel %vm332, %v1938, 0
        %v2048 = vsel %vm332, %v1940, 0
        %v2051 = vsel %vm332, %v1942, 0
        %v2054 = vsel %vm332, %v1944, 0
        %v2057 = vsel %vm332, %v1946, 0
        %v2060 = vsel %vm332, %v1948, 0
        %v2063 = vsel %vm332, %v1950, 0
        %2065 = vmatpush.msra.mxu0 %v1966
        %2066 = vmatpush.msra.mxu0 %v1965
        %2067 = vmatpush.msra.mxu0 %v1964
        %2068 = vmatpush.msra.mxu0 %v1963
        %2069 = vmatpush.msra.mxu0 %v1962
        %2070 = vmatpush.msra.mxu0 %v1961
        %2071 = vmatpush.msra.mxu0 %v1960
        %2072 = vmatpush.msra.mxu0 %v1959
        %2073 = vmatpush.msra.mxu0 %v1958
        %2074 = vmatpush.msra.mxu0 %v1957
        %2075 = vmatpush.msra.mxu0 %v1956
        %2076 = vmatpush.msra.mxu0 %v1955
        %2077 = vmatpush.msra.mxu0 %v1954
        %2078 = vmatpush.msra.mxu0 %v1953
        %2079 = vmatpush.msra.mxu0 %v1952
        %2080 = vmatpush.msra.mxu0 %v1951
        %2081 = vmatmul.f32.gmra.mxu0 %v1887
        %v2082 = vpop.f32.mrf.mxu0
        %v2083 = vadd.f32 0.0, %v2082
        %2084 = vmatmul.f32.gmra.mxu0 %v1889
        %v2085 = vpop.f32.mrf.mxu0
        %v2086 = vadd.f32 0.0, %v2085
        %2087 = vmatmul.f32.gmra.mxu0 %v1891
        %v2088 = vpop.f32.mrf.mxu0
        %v2089 = vadd.f32 0.0, %v2088
        %2090 = vmatmul.f32.gmra.mxu0 %v1893
        %v2091 = vpop.f32.mrf.mxu0
        %v2092 = vadd.f32 0.0, %v2091
        %2093 = vmatmul.f32.gmra.mxu0 %v1895
        %v2094 = vpop.f32.mrf.mxu0
        %v2095 = vadd.f32 0.0, %v2094
        %2096 = vmatmul.f32.gmra.mxu0 %v1897
        %v2097 = vpop.f32.mrf.mxu0
        %v2098 = vadd.f32 0.0, %v2097
        %2099 = vmatmul.f32.gmra.mxu0 %v1899
        %v2100 = vpop.f32.mrf.mxu0
        %v2101 = vadd.f32 0.0, %v2100
        %2102 = vmatmul.f32.gmra.mxu0 %v1901
        %v2103 = vpop.f32.mrf.mxu0
        %v2104 = vadd.f32 0.0, %v2103
        %2105 = vmatmul.f32.gmra.mxu0 %v1903
        %v2106 = vpop.f32.mrf.mxu0
        %v2107 = vadd.f32 0.0, %v2106
        %2108 = vmatmul.f32.gmra.mxu0 %v1905
        %v2109 = vpop.f32.mrf.mxu0
        %v2110 = vadd.f32 0.0, %v2109
        %2111 = vmatmul.f32.gmra.mxu0 %v1907
        %v2112 = vpop.f32.mrf.mxu0
        %v2113 = vadd.f32 0.0, %v2112
        %2114 = vmatmul.f32.gmra.mxu0 %v1909
        %v2115 = vpop.f32.mrf.mxu0
        %v2116 = vadd.f32 0.0, %v2115
        %2117 = vmatmul.f32.gmra.mxu0 %v1911
        %v2118 = vpop.f32.mrf.mxu0
        %v2119 = vadd.f32 0.0, %v2118
        %2120 = vmatmul.f32.gmra.mxu0 %v1913
        %v2121 = vpop.f32.mrf.mxu0
        %v2122 = vadd.f32 0.0, %v2121
        %2123 = vmatmul.f32.gmra.mxu0 %v1915
        %v2124 = vpop.f32.mrf.mxu0
        %v2125 = vadd.f32 0.0, %v2124
        %2126 = vmatmul.f32.gmra.mxu0 %v1917
        %v2127 = vpop.f32.mrf.mxu0
        %v2128 = vadd.f32 0.0, %v2127
        %2129 = vmatmul.f32.gmra.mxu0 %v1919
        %v2130 = vpop.f32.mrf.mxu0
        %v2131 = vadd.f32 0.0, %v2130
        %2132 = vmatmul.f32.gmra.mxu0 %v1921
        %v2133 = vpop.f32.mrf.mxu0
        %v2134 = vadd.f32 0.0, %v2133
        %2135 = vmatmul.f32.gmra.mxu0 %v1923
        %v2136 = vpop.f32.mrf.mxu0
        %v2137 = vadd.f32 0.0, %v2136
        %2138 = vmatmul.f32.gmra.mxu0 %v1925
        %v2139 = vpop.f32.mrf.mxu0
        %v2140 = vadd.f32 0.0, %v2139
        %2141 = vmatmul.f32.gmra.mxu0 %v1927
        %v2142 = vpop.f32.mrf.mxu0
        %v2143 = vadd.f32 0.0, %v2142
        %2144 = vmatmul.f32.gmra.mxu0 %v1929
        %v2145 = vpop.f32.mrf.mxu0
        %v2146 = vadd.f32 0.0, %v2145
        %2147 = vmatmul.f32.gmra.mxu0 %v1931
        %v2148 = vpop.f32.mrf.mxu0
        %v2149 = vadd.f32 0.0, %v2148
        %2150 = vmatmul.f32.gmra.mxu0 %v1933
        %v2151 = vpop.f32.mrf.mxu0
        %v2152 = vadd.f32 0.0, %v2151
        %2153 = vmatmul.f32.gmra.mxu0 %v1935
        %v2154 = vpop.f32.mrf.mxu0
        %v2155 = vadd.f32 0.0, %v2154
        %2156 = vmatmul.f32.gmra.mxu0 %v1937
        %v2157 = vpop.f32.mrf.mxu0
        %v2158 = vadd.f32 0.0, %v2157
        %2159 = vmatmul.f32.gmra.mxu0 %v1939
        %v2160 = vpop.f32.mrf.mxu0
        %v2161 = vadd.f32 0.0, %v2160
        %2162 = vmatmul.f32.gmra.mxu0 %v1941
        %v2163 = vpop.f32.mrf.mxu0
        %v2164 = vadd.f32 0.0, %v2163
        %2165 = vmatmul.f32.gmra.mxu0 %v1943
        %v2166 = vpop.f32.mrf.mxu0
        %v2167 = vadd.f32 0.0, %v2166
        %2168 = vmatmul.f32.gmra.mxu0 %v1945
        %v2169 = vpop.f32.mrf.mxu0
        %v2170 = vadd.f32 0.0, %v2169
        %2171 = vmatmul.f32.gmra.mxu0 %v1947
        %v2172 = vpop.f32.mrf.mxu0
        %v2173 = vadd.f32 0.0, %v2172
        %2174 = vmatmul.f32.gmra.mxu0 %v1949
        %v2175 = vpop.f32.mrf.mxu0
        %v2176 = vadd.f32 0.0, %v2175
        %2177 = vdwg.mxu0
        %2178 = vmatpush.msra.mxu0 0.0
        %2179 = vmatpush.msra.mxu0 0.0
        %2180 = vmatpush.msra.mxu0 0.0
        %2181 = vmatpush.msra.mxu0 0.0
        %2182 = vmatpush.msra.mxu0 0.0
        %2183 = vmatpush.msra.mxu0 0.0
        %2184 = vmatpush.msra.mxu0 0.0
        %2185 = vmatpush.msra.mxu0 0.0
        %2186 = vmatpush.msra.mxu0 0.0
        %2187 = vmatpush.msra.mxu0 0.0
        %2188 = vmatpush.msra.mxu0 0.0
        %2189 = vmatpush.msra.mxu0 0.0
        %2190 = vmatpush.msra.mxu0 0.0
        %2191 = vmatpush.msra.mxu0 0.0
        %2192 = vmatpush.msra.mxu0 %v1968
        %2193 = vmatpush.msra.mxu0 %v1967
        %2194 = vmatmul.f32.gmra.mxu0 %v1970
        %v2195 = vpop.f32.mrf.mxu0
        %v2196 = vadd.f32 %v2083, %v2195
        %2197 = vmatmul.f32.gmra.mxu0 %v1973
        %v2198 = vpop.f32.mrf.mxu0
        %v2199 = vadd.f32 %v2086, %v2198
        %2200 = vmatmul.f32.gmra.mxu0 %v1976
        %v2201 = vpop.f32.mrf.mxu0
        %v2202 = vadd.f32 %v2089, %v2201
        %2203 = vmatmul.f32.gmra.mxu0 %v1979
        %v2204 = vpop.f32.mrf.mxu0
        %v2205 = vadd.f32 %v2092, %v2204
        %2206 = vmatmul.f32.gmra.mxu0 %v1982
        %v2207 = vpop.f32.mrf.mxu0
        %v2208 = vadd.f32 %v2095, %v2207
        %2209 = vmatmul.f32.gmra.mxu0 %v1985
        %v2210 = vpop.f32.mrf.mxu0
        %v2211 = vadd.f32 %v2098, %v2210
        %2212 = vmatmul.f32.gmra.mxu0 %v1988
        %v2213 = vpop.f32.mrf.mxu0
        %v2214 = vadd.f32 %v2101, %v2213
        %2215 = vmatmul.f32.gmra.mxu0 %v1991
        %v2216 = vpop.f32.mrf.mxu0
        %v2217 = vadd.f32 %v2104, %v2216
        %2218 = vmatmul.f32.gmra.mxu0 %v1994
        %v2219 = vpop.f32.mrf.mxu0
        %v2220 = vadd.f32 %v2107, %v2219
        %2221 = vmatmul.f32.gmra.mxu0 %v1997
        %v2222 = vpop.f32.mrf.mxu0
        %v2223 = vadd.f32 %v2110, %v2222
        %2224 = vmatmul.f32.gmra.mxu0 %v2000
        %v2225 = vpop.f32.mrf.mxu0
        %v2226 = vadd.f32 %v2113, %v2225
        %2227 = vmatmul.f32.gmra.mxu0 %v2003
        %v2228 = vpop.f32.mrf.mxu0
        %v2229 = vadd.f32 %v2116, %v2228
        %2230 = vmatmul.f32.gmra.mxu0 %v2006
        %v2231 = vpop.f32.mrf.mxu0
        %v2232 = vadd.f32 %v2119, %v2231
        %2233 = vmatmul.f32.gmra.mxu0 %v2009
        %v2234 = vpop.f32.mrf.mxu0
        %v2235 = vadd.f32 %v2122, %v2234
        %2236 = vmatmul.f32.gmra.mxu0 %v2012
        %v2237 = vpop.f32.mrf.mxu0
        %v2238 = vadd.f32 %v2125, %v2237
        %2239 = vmatmul.f32.gmra.mxu0 %v2015
        %v2240 = vpop.f32.mrf.mxu0
        %v2241 = vadd.f32 %v2128, %v2240
        %2242 = vmatmul.f32.gmra.mxu0 %v2018
        %v2243 = vpop.f32.mrf.mxu0
        %v2244 = vadd.f32 %v2131, %v2243
        %2245 = vmatmul.f32.gmra.mxu0 %v2021
        %v2246 = vpop.f32.mrf.mxu0
        %v2247 = vadd.f32 %v2134, %v2246
        %2248 = vmatmul.f32.gmra.mxu0 %v2024
        %v2249 = vpop.f32.mrf.mxu0
        %v2250 = vadd.f32 %v2137, %v2249
        %2251 = vmatmul.f32.gmra.mxu0 %v2027
        %v2252 = vpop.f32.mrf.mxu0
        %v2253 = vadd.f32 %v2140, %v2252
        %2254 = vmatmul.f32.gmra.mxu0 %v2030
        %v2255 = vpop.f32.mrf.mxu0
        %v2256 = vadd.f32 %v2143, %v2255
        %2257 = vmatmul.f32.gmra.mxu0 %v2033
        %v2258 = vpop.f32.mrf.mxu0
        %v2259 = vadd.f32 %v2146, %v2258
        %2260 = vmatmul.f32.gmra.mxu0 %v2036
        %v2261 = vpop.f32.mrf.mxu0
        %v2262 = vadd.f32 %v2149, %v2261
        %2263 = vmatmul.f32.gmra.mxu0 %v2039
        %v2264 = vpop.f32.mrf.mxu0
        %v2265 = vadd.f32 %v2152, %v2264
        %2266 = vmatmul.f32.gmra.mxu0 %v2042
        %v2267 = vpop.f32.mrf.mxu0
        %v2268 = vadd.f32 %v2155, %v2267
        %2269 = vmatmul.f32.gmra.mxu0 %v2045
        %v2270 = vpop.f32.mrf.mxu0
        %v2271 = vadd.f32 %v2158, %v2270
        %2272 = vmatmul.f32.gmra.mxu0 %v2048
        %v2273 = vpop.f32.mrf.mxu0
        %v2274 = vadd.f32 %v2161, %v2273
        %2275 = vmatmul.f32.gmra.mxu0 %v2051
        %v2276 = vpop.f32.mrf.mxu0
        %v2277 = vadd.f32 %v2164, %v2276
        %2278 = vmatmul.f32.gmra.mxu0 %v2054
        %v2279 = vpop.f32.mrf.mxu0
        %v2280 = vadd.f32 %v2167, %v2279
        %2281 = vmatmul.f32.gmra.mxu0 %v2057
        %v2282 = vpop.f32.mrf.mxu0
        %v2283 = vadd.f32 %v2170, %v2282
        %2284 = vmatmul.f32.gmra.mxu0 %v2060
        %v2285 = vpop.f32.mrf.mxu0
        %v2286 = vadd.f32 %v2173, %v2285
        %2287 = vmatmul.f32.gmra.mxu0 %v2063
        %v2288 = vpop.f32.mrf.mxu0
        %v2289 = vadd.f32 %v2176, %v2288
        %2290 = vdwg.mxu0
        %vm2291 = vcmask 261120
        %2292 = vst.msk [vmem:[%s190] sm:$0xff] %vm2291, %v2196
        %2293 = vst.msk [vmem:[%s190 + $0x8] sm:$0xff] %vm2291, %v2199
        %2294 = vst.msk [vmem:[%s190 + $0x10] sm:$0xff] %vm2291, %v2202
        %2295 = vst.msk [vmem:[%s190 + $0x18] sm:$0xff] %vm2291, %v2205
        %2296 = vst.msk [vmem:[%s190 + $0x20] sm:$0xff] %vm2291, %v2208
        %2297 = vst.msk [vmem:[%s190 + $0x28] sm:$0xff] %vm2291, %v2211
        %2298 = vst.msk [vmem:[%s190 + $0x30] sm:$0xff] %vm2291, %v2214
        %2299 = vst.msk [vmem:[%s190 + $0x38] sm:$0xff] %vm2291, %v2217
        %2300 = vst.msk [vmem:[%s190 + $0x40] sm:$0xff] %vm2291, %v2220
        %2301 = vst.msk [vmem:[%s190 + $0x48] sm:$0xff] %vm2291, %v2223
        %2302 = vst.msk [vmem:[%s190 + $0x50] sm:$0xff] %vm2291, %v2226
        %2303 = vst.msk [vmem:[%s190 + $0x58] sm:$0xff] %vm2291, %v2229
        %2304 = vst.msk [vmem:[%s190 + $0x60] sm:$0xff] %vm2291, %v2232
        %2305 = vst.msk [vmem:[%s190 + $0x68] sm:$0xff] %vm2291, %v2235
        %2306 = vst.msk [vmem:[%s190 + $0x70] sm:$0xff] %vm2291, %v2238
        %2307 = vst.msk [vmem:[%s190 + $0x78] sm:$0xff] %vm2291, %v2241
        %2308 = vst.msk [vmem:[%s190 + $0x80] sm:$0xff] %vm2291, %v2244
        %2309 = vst.msk [vmem:[%s190 + $0x88] sm:$0xff] %vm2291, %v2247
        %2310 = vst.msk [vmem:[%s190 + $0x90] sm:$0xff] %vm2291, %v2250
        %2311 = vst.msk [vmem:[%s190 + $0x98] sm:$0xff] %vm2291, %v2253
        %2312 = vst.msk [vmem:[%s190 + $0xa0] sm:$0xff] %vm2291, %v2256
        %2313 = vst.msk [vmem:[%s190 + $0xa8] sm:$0xff] %vm2291, %v2259
        %2314 = vst.msk [vmem:[%s190 + $0xb0] sm:$0xff] %vm2291, %v2262
        %2315 = vst.msk [vmem:[%s190 + $0xb8] sm:$0xff] %vm2291, %v2265
        %2316 = vst.msk [vmem:[%s190 + $0xc0] sm:$0xff] %vm2291, %v2268
        %2317 = vst.msk [vmem:[%s190 + $0xc8] sm:$0xff] %vm2291, %v2271
        %2318 = vst.msk [vmem:[%s190 + $0xd0] sm:$0xff] %vm2291, %v2274
        %2319 = vst.msk [vmem:[%s190 + $0xd8] sm:$0xff] %vm2291, %v2277
        %2320 = vst.msk [vmem:[%s190 + $0xe0] sm:$0xff] %vm2291, %v2280
        %2321 = vst.msk [vmem:[%s190 + $0xe8] sm:$0xff] %vm2291, %v2283
        %2322 = vst.msk [vmem:[%s190 + $0xf0] sm:$0xff] %vm2291, %v2286
        %2323 = vst.msk [vmem:[%s190 + $0xf8] sm:$0xff] %vm2291, %v2289
        %s2324 = sand.u32 %s115, 1
        %s2325 = scalar_lea.sflag [#allocation5], %s2324
        %s2326 = sand.u32 %s115, 1
        %s2327 = smul.addr %s2326, 256
        %s2328 = scalar_lea.vmem [#allocation4], %s2327
        // Predicated region
        $region37: #{mnist_block_forward.1} parent=35 // pred_check
          %p2329 = pneg %p125
        $region38: #{mnist_block_forward.1} parent=35 // pred_check_branch
          %2331 = sbr.rel (%p2329) target = $region40
        $region39: #{mnist_block_forward.1} parent=35 // pred_region
          %2333 = vsyncadd %s2325, 0
          %s2334 = smul.addr %s18, 32
          %s2335 = smul.addr %s2334, 8
          %s2336 = scalar_lea.hbm %s4, %s2335
          %s2337 = sshll.u32 %s2328, 4
          %s2338 = int_to_ptr.vmem [resolvable:$true] %s2337
          %s2339 = sshll.u32 %s2336, 4
          %s2340 = int_to_ptr.hbm [resolvable:$true] %s2339
          %2345 = dma.vmem_to_hbm [thread:$0]  %s2338, 4096, %s2340, %s2325, 128, 128, 8
        $region40: #{mnist_block_forward.1} parent=35 // pred_fallthru
          _
      $region36: #{mnist_block_forward.1} parent=5 // pred_fallthru
        _
      %p2346 = scmp.le.s32.totalorder 2, %s13
      // Predicated region
      $region41: #{mnist_block_forward.1} parent=5 // pred_check
        %p2347 = pneg %p2346
      $region42: #{mnist_block_forward.1} parent=5 // pred_check_branch
        %2349 = sbr.rel (%p2347) target = $region44
      $region43: #{mnist_block_forward.1} parent=5 // pred_region
        %s2350 = ssub.s32 %s13, 2
        // Predicated region
        $region45: #{mnist_block_forward.1} parent=43 // pred_check
          %p2351 = pneg %p131
        $region46: #{mnist_block_forward.1} parent=43 // pred_check_branch
          %2353 = sbr.rel (%p2351) target = $region48
        $region47: #{mnist_block_forward.1} parent=43 // pred_region
          %s2354 = sand.u32 %s116, 1
          %s2355 = scalar_lea.sflag [#allocation5], %s2354
          %s2356 = sand.u32 %s116, 1
          %s2357 = smul.addr %s2356, 256
          %s2358 = scalar_lea.vmem [#allocation4], %s2357
          %2360 = dma.done %s2355, 4096
        $region48: #{mnist_block_forward.1} parent=43 // pred_fallthru
          _
      $region44: #{mnist_block_forward.1} parent=5 // pred_fallthru
        _
    $region6: #{mnist_block_forward.1} parent=1 // loop_footer
      %s17 = sadd.s32 1, %s13
    $region7: #{mnist_block_forward.1} parent=1 // loop_footer_branch
      %12 = sbr.rel target = $region3
    $region8: #{mnist_block_forward.1} parent=1 // loop_exit
      _
    %2361 = vsyncpa [#allocation5], 1
    %s2362 = scalar_lea.sflag [#allocation5], 1
    %2363 = vsyncpa %s2362, 1

</llo_original>
